<compile_context>
chip_gen: v7x
topology: tpu7x:2x2x1
jax: 0.10.0
libtpu: 0.0.40
codegen_flags: <defaults>
</compile_context>

<pallas_src>
import jax
import jax.numpy as jnp
from jax import lax
from jax.experimental import pallas as pl
from jax.experimental.pallas import tpu as pltpu

# ---------------------------- problem sizes ----------------------------------
B = 2                # batch
N = 8                # agents per batch element
P_DIM = 2            # position dimensionality
IN_FEATURES = 6
MSG_FEATURES = 32
OUT_FEATURES = 4
COMM_RADIUS = 0.8

HIDDEN = 64                      # common padded width for every layer
BN = B * N                       # 16  flattened agents
R = BN * N                       # 128 flattened (batch-local) edge candidates

# spare columns of the activation slab used to carry raw pos / time.
# They must live above every real fan-in so the zero-padded weight rows
# guarantee they never leak into a matmul.
POS_COL = 60
TIME_COL = POS_COL + P_DIM       # 62
GW1_T_ROW = 11                   # row of the bias slab holding gW1's time row
assert POS_COL >= max(IN_FEATURES, MSG_FEATURES) and TIME_COL + 1 <= HIDDEN


# ---------------------------- Pallas kernel ----------------------------------
def gnn_branch_kernel(act_x_ref, act_hi_ref, sel_ref, sagg_ref, w_ref, b_ref,
                      r2_ref, out_ref):
    f32 = jnp.float32

    def w(k):                     # (HIDDEN, HIDDEN) padded weight k
        return w_ref[k]

    def b(k):                     # (1, HIDDEN) padded bias k
        return b_ref[k:k + 1, :]

    def lin(h, k):
        return jnp.dot(h, w(k), preferred_element_type=f32) + b(k)

    def relu(v):
        return jnp.maximum(v, 0.0)

    # ----- encoder MLP: 6 -> 16 -> 32 -> 32 -> 32 (zero-padded to width 64) -----
    h = relu(lin(act_x_ref[...], 0))
    h = relu(lin(h, 1))
    h = relu(lin(h, 2))
    enc = lin(h, 3)               # (BN, HIDDEN), cols >= MSG_FEATURES are zero

    # splice raw pos/time back next to the encoding: act_hi is non-zero only in
    # columns >= POS_COL and enc is non-zero only in columns < MSG_FEATURES,
    # so a plain add is exact (no iota / where select on the critical path).
    msg = enc + act_hi_ref[...]                                    # (BN, HIDDEN)

    # ----- fused pairwise gather: msg_j - msg_i in ONE selection matmul -----
    # sel_ref = sel_j - sel_i with entries in {-1, 0, +1}: exact in f32.
    d = jnp.dot(sel_ref[...], msg, preferred_element_type=f32)     # (R, HIDDEN)

    diff_t = d[:, TIME_COL:TIME_COL + 1]                           # (R,1) time_j - time_i
    pd0 = d[:, POS_COL:POS_COL + 1]                                # (R,1) pos diffs
    pd1 = d[:, POS_COL + 1:POS_COL + 2]
    dist2 = pd0 * pd0 + pd1 * pd1                                  # (R,1) no XLU reduce

    # radius_graph(loop=True) adjacency (self loops: dist 0 <= r^2).
    # TODO(synk): torch_geometric.radius_graph caps neighbors at max_num_neighbors=32;
    # with N=8 the cap is never hit, so the dense mask is exact here.
    edge = (dist2 <= r2_ref[0]).astype(f32)                        # (R,1)

    # ----- gnn edge MLP: (32+1) -> 64 -> 64 [final 64->64 reassociated below] -----
    # w(4) = gW1[:32] zero-padded, so the pos/time columns of d cannot leak;
    # the time feature enters as a broadcast multiply with gW1's time row.
    gw1_t = b_ref[GW1_T_ROW:GW1_T_ROW + 1, :]                      # (1, HIDDEN)
    g = relu(jnp.dot(d, w(4), preferred_element_type=f32) + diff_t * gw1_t + b(4))
    g = relu(lin(g, 5))                                            # (R, HIDDEN)

    # ----- masked segment-sum (aggr='add') as an MXU matmul, with the final
    # (linear, no-ReLU) edge layer moved past the aggregation:
    #   sum_e edge*(g@W6 + b6) = (sum_e edge*g)@W6 + (sum_e edge)*b6
    s_agg = sagg_ref[...]                                          # (BN, R) block-diag ones
    agg_pre = jnp.dot(s_agg, g * edge, preferred_element_type=f32)  # (BN, HIDDEN)
    cnt = jnp.dot(s_agg, edge, preferred_element_type=f32)          # (BN, 1)
    agg = jnp.dot(agg_pre, w(6), preferred_element_type=f32) + cnt * b(6)

    # ----- post MLP: 64 -> 64 -> 64 -> 64 -> 4 (padded; wrapper slices cols) -----
    h = relu(lin(agg, 7))
    h = relu(lin(h, 8))
    h = relu(lin(h, 9))
    out_ref[...] = lin(h, 10).astype(out_ref.dtype)                # (BN, HIDDEN)


# ---------------------------- one-time host-side packing ----------------------
def pack_params(params):
    """Pack the 22 natural-shape params into one weight slab and one bias slab.
    Called ONCE at model init (hoisted out of the per-step path)."""
    (eW1, eb1, eW2, eb2, eW3, eb3, eW4, eb4,
     gW1, gb1, gW2, gb2, gW3, gb3,
     pW1, pb1, pW2, pb2, pW3, pb3, pW4, pb4) = params

    def pad_w(wm):
        fi, fo = wm.shape
        return jnp.zeros((HIDDEN, HIDDEN), jnp.float32).at[:fi, :fo].set(wm)

    def pad_b(bv):
        bv = bv.reshape(-1)
        return jnp.zeros((HIDDEN,), jnp.float32).at[:bv.shape[0]].set(bv)

    gW1_enc = gW1[:MSG_FEATURES]          # (32, 64) encoder-feature rows
    gW1_t = gW1[MSG_FEATURES:]            # (1, 64)  time row

    ws = [eW1, eW2, eW3, eW4, gW1_enc, gW2, gW3, pW1, pW2, pW3, pW4]
    bs = [eb1, eb2, eb3, eb4, gb1, gb2, gb3, pb1, pb2, pb3, pb4]

    wslab = jnp.stack([pad_w(wm) for wm in ws], axis=0)              # (11, 64, 64)
    bslab = jnp.stack([pad_b(bv) for bv in bs] + [pad_b(gW1_t)], 0)  # (12, 64)
    return wslab, bslab


def make_selection_matrices():
    """Constant gather / segment-sum matrices; built ONCE and passed to the kernel.
    Edge row r = b*N*N + i*N + j -> target i_flat = r // N, source j_flat = b*N + j."""
    r = jnp.arange(R)
    tgt = r // N                              # flat target index i
    src = (r // (N * N)) * N + (r % N)        # flat source index j
    eye = jnp.eye(BN, dtype=jnp.float32)
    sel_diff = eye[src] - eye[tgt]            # (R, BN): sel_j - sel_i
    s_agg = (jnp.arange(BN)[:, None] == tgt[None, :]).astype(jnp.float32)  # (BN, R)
    return sel_diff, s_agg


# ---------------------------- per-call activation packing ---------------------
def pack_activations(p, x, time):
    act_x = jnp.zeros((BN, HIDDEN), jnp.float32)
    act_x = act_x.at[:, :IN_FEATURES].set(x.reshape(BN, IN_FEATURES))
    act_hi = jnp.zeros((BN, HIDDEN), jnp.float32)
    act_hi = act_hi.at[:, POS_COL:POS_COL + P_DIM].set(p.reshape(BN, P_DIM))
    act_hi = act_hi.at[:, TIME_COL:TIME_COL + 1].set(time.reshape(BN, 1))
    return act_x, act_hi


# ---------------------------- wrapper (jitted per-call path) -------------------
@jax.jit
def gnn_branch(p, x, time, wslab, bslab, sel_diff, s_agg, r2):
    """p:(B,N,2) x:(B,N,6) time:(B,N,1); the rest are packed one-time constants."""
    act_x, act_hi = pack_activations(p, x, time)

    out_flat = pl.pallas_call(
        gnn_branch_kernel,
        out_shape=jax.ShapeDtypeStruct((BN, HIDDEN), jnp.float32),
        in_specs=[
            pl.BlockSpec(memory_space=pltpu.MemorySpace.VMEM),   # act_x slab
            pl.BlockSpec(memory_space=pltpu.MemorySpace.VMEM),   # act_hi (pos/time) slab
            pl.BlockSpec(memory_space=pltpu.MemorySpace.VMEM),   # sel_diff (R,BN)
            pl.BlockSpec(memory_space=pltpu.MemorySpace.VMEM),   # s_agg (BN,R)
            pl.BlockSpec(memory_space=pltpu.MemorySpace.VMEM),   # weight slab
            pl.BlockSpec(memory_space=pltpu.MemorySpace.VMEM),   # bias slab
            pl.BlockSpec(memory_space=pltpu.MemorySpace.SMEM),   # r^2 scalar
        ],
        out_specs=pl.BlockSpec(memory_space=pltpu.MemorySpace.VMEM),
    )(act_x, act_hi, sel_diff, s_agg, wslab, bslab, r2)

    # lane-dense 64-wide store in the kernel; the cheap 4-column slice is here.
    return out_flat[:, :OUT_FEATURES].reshape(B, N, OUT_FEATURES)


# ---------------------------- parameter init ----------------------------------
def init_linear(key, fan_in, fan_out):
    kw, kb = jax.random.split(key)
    bound = 1.0 / (fan_in ** 0.5)
    w = jax.random.uniform(kw, (fan_in, fan_out), jnp.float32, -bound, bound)
    b = jax.random.uniform(kb, (1, fan_out), jnp.float32, -bound, bound)
    return w, b


def make_params(key):
    dims = [
        # encoder: Din -> 16 -> 32 -> 32 -> MSG
        (IN_FEATURES, 16), (16, 32), (32, 32), (32, MSG_FEATURES),
        # gnn: (1 + MSG) -> 64 -> 64 -> 64
        (1 + MSG_FEATURES, 64), (64, 64), (64, 64),
        # post: 64 -> 64 -> 64 -> 64 -> OUT
        (64, 64), (64, 64), (64, 64), (64, OUT_FEATURES),
    ]
    keys = jax.random.split(key, len(dims))
    params = []
    for k, (fi, fo) in zip(keys, dims):
        w, b = init_linear(k, fi, fo)
        params += [w, b]
    return params


# ---------------------------- pure-JAX reference -------------------------------
def reference(p, x, time, comm_radius, params):
    (eW1, eb1, eW2, eb2, eW3, eb3, eW4, eb4,
     gW1, gb1, gW2, gb2, gW3, gb3,
     pW1, pb1, pW2, pb2, pW3, pb3, pW4, pb4) = params
    relu = lambda v: jnp.maximum(v, 0.0)

    h = relu(x @ eW1 + eb1)
    h = relu(h @ eW2 + eb2)
    h = relu(h @ eW3 + eb3)
    enc = h @ eW4 + eb4
    msg = jnp.concatenate([enc, time], axis=2)                     # (B,N,F)

    diff = msg[:, None, :, :] - msg[:, :, None, :]                 # (B,N,N,F) msg_j - msg_i
    g = relu(diff @ gW1 + gb1)
    g = relu(g @ gW2 + gb2)
    g = g @ gW3 + gb3                                              # (B,N,N,64)

    pd = p[:, None, :, :] - p[:, :, None, :]
    dist2 = jnp.sum(pd * pd, axis=-1)                              # (B,N,N)
    mask = dist2 <= comm_radius[0] ** 2
    agg = jnp.sum(jnp.where(mask[..., None], g, 0.0), axis=2)      # (B,N,64)

    h = relu(agg @ pW1 + pb1)
    h = relu(h @ pW2 + pb2)
    h = relu(h @ pW3 + pb3)
    return h @ pW4 + pb4


# ---------------------------- main ---------------------------------------------
if __name__ == "__main__":
    key = jax.random.PRNGKey(0)
    kp, kx, kt, kw = jax.random.split(key, 4)

    p = jax.random.uniform(kp, (B, N, P_DIM), jnp.float32)          # positions in [0,1]^2
    x = jax.random.normal(kx, (B, N, IN_FEATURES), jnp.float32)
    time = jax.random.uniform(kt, (B, N, 1), jnp.float32)
    comm_radius = jnp.array([COMM_RADIUS], jnp.float32)
    params = make_params(kw)

    # one-time packing, hoisted out of the per-call path
    wslab, bslab = pack_params(params)
    sel_diff, s_agg = make_selection_matrices()
    r2 = (comm_radius[:1] ** 2).astype(jnp.float32)                 # (1,) SMEM scalar

    out = gnn_branch(p, x, time, wslab, bslab, sel_diff, s_agg, r2)
    out = jax.block_until_ready(out)

    ref = reference(p, x, time, comm_radius, params)
    assert out.shape == (B, N, OUT_FEATURES)
    assert jnp.allclose(out, ref, atol=1e-4, rtol=1e-4), (
        f"max abs err {jnp.max(jnp.abs(out - ref))}")

    print("KERNEL_OK")
</pallas_src>

<mosaic_0001>
module attributes {stable_mosaic.version = 11 : i64} {
  func.func @gnn_branch_kernel(%arg0: memref<16x64xf32, #tpu.memory_space<vmem>>, %arg1: memref<16x64xf32, #tpu.memory_space<vmem>>, %arg2: memref<128x16xf32, #tpu.memory_space<vmem>>, %arg3: memref<16x128xf32, #tpu.memory_space<vmem>>, %arg4: memref<11x64x64xf32, #tpu.memory_space<vmem>>, %arg5: memref<12x64xf32, #tpu.memory_space<vmem>>, %arg6: memref<1xf32, #tpu.memory_space<smem>>, %arg7: memref<16x64xf32, #tpu.memory_space<vmem>>) attributes {dimension_semantics = [], scalar_prefetch = 0 : i64, scratch_operands = 0 : i64, tpu.core_type = #tpu.core_type<tc>} {
    %c0 = arith.constant 0 : index
    %c0_0 = arith.constant 0 : index
    %0 = vector.load %arg0[%c0, %c0_0] : memref<16x64xf32, #tpu.memory_space<vmem>>, vector<16x64xf32>
    %c0_1 = arith.constant 0 : index
    %c0_2 = arith.constant 0 : index
    %c0_3 = arith.constant 0 : index
    %1 = vector.load %arg4[%c0_1, %c0_2, %c0_3] : memref<11x64x64xf32, #tpu.memory_space<vmem>>, vector<1x64x64xf32>
    %2 = vector.shape_cast %1 : vector<1x64x64xf32> to vector<64x64xf32>
    %cst = arith.constant dense<0.000000e+00> : vector<16x64xf32>
    %3 = tpu.matmul %0, %2, %cst {dimension_numbers = #tpu.dot_dimension_numbers<[1], [0], [0], [1], [0, 0, 1, 1], [], []>} : vector<16x64xf32>, vector<64x64xf32>, vector<16x64xf32> -> vector<16x64xf32>
    %c0_4 = arith.constant 0 : index
    %c0_5 = arith.constant 0 : index
    %4 = vector.load %arg5[%c0_4, %c0_5] : memref<12x64xf32, #tpu.memory_space<vmem>>, vector<1x64xf32>
    %5 = vector.broadcast %4 : vector<1x64xf32> to vector<16x64xf32>
    %6 = arith.addf %3, %5 : vector<16x64xf32>
    %cst_6 = arith.constant 0.000000e+00 : f32
    %7 = vector.broadcast %cst_6 : f32 to vector<16x64xf32>
    %8 = arith.maximumf %6, %7 : vector<16x64xf32>
    %c1 = arith.constant 1 : index
    %c0_7 = arith.constant 0 : index
    %c0_8 = arith.constant 0 : index
    %9 = vector.load %arg4[%c1, %c0_7, %c0_8] : memref<11x64x64xf32, #tpu.memory_space<vmem>>, vector<1x64x64xf32>
    %10 = vector.shape_cast %9 : vector<1x64x64xf32> to vector<64x64xf32>
    %cst_9 = arith.constant dense<0.000000e+00> : vector<16x64xf32>
    %11 = tpu.matmul %8, %10, %cst_9 {dimension_numbers = #tpu.dot_dimension_numbers<[1], [0], [0], [1], [0, 0, 1, 1], [], []>} : vector<16x64xf32>, vector<64x64xf32>, vector<16x64xf32> -> vector<16x64xf32>
    %c1_10 = arith.constant 1 : index
    %c0_11 = arith.constant 0 : index
    %12 = vector.load %arg5[%c1_10, %c0_11] : memref<12x64xf32, #tpu.memory_space<vmem>>, vector<1x64xf32>
    %13 = vector.broadcast %12 : vector<1x64xf32> to vector<16x64xf32>
    %14 = arith.addf %11, %13 : vector<16x64xf32>
    %cst_12 = arith.constant 0.000000e+00 : f32
    %15 = vector.broadcast %cst_12 : f32 to vector<16x64xf32>
    %16 = arith.maximumf %14, %15 : vector<16x64xf32>
    %c2 = arith.constant 2 : index
    %c0_13 = arith.constant 0 : index
    %c0_14 = arith.constant 0 : index
    %17 = vector.load %arg4[%c2, %c0_13, %c0_14] : memref<11x64x64xf32, #tpu.memory_space<vmem>>, vector<1x64x64xf32>
    %18 = vector.shape_cast %17 : vector<1x64x64xf32> to vector<64x64xf32>
    %cst_15 = arith.constant dense<0.000000e+00> : vector<16x64xf32>
    %19 = tpu.matmul %16, %18, %cst_15 {dimension_numbers = #tpu.dot_dimension_numbers<[1], [0], [0], [1], [0, 0, 1, 1], [], []>} : vector<16x64xf32>, vector<64x64xf32>, vector<16x64xf32> -> vector<16x64xf32>
    %c2_16 = arith.constant 2 : index
    %c0_17 = arith.constant 0 : index
    %20 = vector.load %arg5[%c2_16, %c0_17] : memref<12x64xf32, #tpu.memory_space<vmem>>, vector<1x64xf32>
    %21 = vector.broadcast %20 : vector<1x64xf32> to vector<16x64xf32>
    %22 = arith.addf %19, %21 : vector<16x64xf32>
    %cst_18 = arith.constant 0.000000e+00 : f32
    %23 = vector.broadcast %cst_18 : f32 to vector<16x64xf32>
    %24 = arith.maximumf %22, %23 : vector<16x64xf32>
    %c3 = arith.constant 3 : index
    %c0_19 = arith.constant 0 : index
    %c0_20 = arith.constant 0 : index
    %25 = vector.load %arg4[%c3, %c0_19, %c0_20] : memref<11x64x64xf32, #tpu.memory_space<vmem>>, vector<1x64x64xf32>
    %26 = vector.shape_cast %25 : vector<1x64x64xf32> to vector<64x64xf32>
    %cst_21 = arith.constant dense<0.000000e+00> : vector<16x64xf32>
    %27 = tpu.matmul %24, %26, %cst_21 {dimension_numbers = #tpu.dot_dimension_numbers<[1], [0], [0], [1], [0, 0, 1, 1], [], []>} : vector<16x64xf32>, vector<64x64xf32>, vector<16x64xf32> -> vector<16x64xf32>
    %c3_22 = arith.constant 3 : index
    %c0_23 = arith.constant 0 : index
    %28 = vector.load %arg5[%c3_22, %c0_23] : memref<12x64xf32, #tpu.memory_space<vmem>>, vector<1x64xf32>
    %29 = vector.broadcast %28 : vector<1x64xf32> to vector<16x64xf32>
    %30 = arith.addf %27, %29 : vector<16x64xf32>
    %c0_24 = arith.constant 0 : index
    %c0_25 = arith.constant 0 : index
    %31 = vector.load %arg1[%c0_24, %c0_25] : memref<16x64xf32, #tpu.memory_space<vmem>>, vector<16x64xf32>
    %32 = arith.addf %30, %31 : vector<16x64xf32>
    %c0_26 = arith.constant 0 : index
    %c0_27 = arith.constant 0 : index
    %33 = vector.load %arg2[%c0_26, %c0_27] : memref<128x16xf32, #tpu.memory_space<vmem>>, vector<128x16xf32>
    %cst_28 = arith.constant dense<0.000000e+00> : vector<128x64xf32>
    %34 = tpu.matmul %33, %32, %cst_28 {dimension_numbers = #tpu.dot_dimension_numbers<[1], [0], [0], [1], [0, 0, 1, 1], [], []>} : vector<128x16xf32>, vector<16x64xf32>, vector<128x64xf32> -> vector<128x64xf32>
    %35 = vector.extract_strided_slice %34 {offsets = [0, 62], sizes = [128, 1], strides = [1, 1]} : vector<128x64xf32> to vector<128x1xf32>
    %36 = vector.extract_strided_slice %34 {offsets = [0, 60], sizes = [128, 1], strides = [1, 1]} : vector<128x64xf32> to vector<128x1xf32>
    %37 = vector.extract_strided_slice %34 {offsets = [0, 61], sizes = [128, 1], strides = [1, 1]} : vector<128x64xf32> to vector<128x1xf32>
    %38 = arith.mulf %36, %36 : vector<128x1xf32>
    %39 = arith.mulf %37, %37 : vector<128x1xf32>
    %40 = arith.addf %38, %39 : vector<128x1xf32>
    %c0_29 = arith.constant 0 : index
    %41 = memref.load %arg6[%c0_29] : memref<1xf32, #tpu.memory_space<smem>>
    %42 = vector.broadcast %41 : f32 to vector<128x1xf32>
    %43 = arith.cmpf ole, %40, %42 : vector<128x1xf32>
    %44 = arith.extui %43 : vector<128x1xi1> to vector<128x1xi32>
    %45 = arith.sitofp %44 : vector<128x1xi32> to vector<128x1xf32>
    %c11 = arith.constant 11 : index
    %c0_30 = arith.constant 0 : index
    %46 = vector.load %arg5[%c11, %c0_30] : memref<12x64xf32, #tpu.memory_space<vmem>>, vector<1x64xf32>
    %c4 = arith.constant 4 : index
    %c0_31 = arith.constant 0 : index
    %c0_32 = arith.constant 0 : index
    %47 = vector.load %arg4[%c4, %c0_31, %c0_32] : memref<11x64x64xf32, #tpu.memory_space<vmem>>, vector<1x64x64xf32>
    %48 = vector.shape_cast %47 : vector<1x64x64xf32> to vector<64x64xf32>
    %cst_33 = arith.constant dense<0.000000e+00> : vector<128x64xf32>
    %49 = tpu.matmul %34, %48, %cst_33 {dimension_numbers = #tpu.dot_dimension_numbers<[1], [0], [0], [1], [0, 0, 1, 1], [], []>} : vector<128x64xf32>, vector<64x64xf32>, vector<128x64xf32> -> vector<128x64xf32>
    %50 = vector.broadcast %35 : vector<128x1xf32> to vector<128x64xf32>
    %51 = vector.broadcast %46 : vector<1x64xf32> to vector<128x64xf32>
    %52 = arith.mulf %50, %51 : vector<128x64xf32>
    %53 = arith.addf %49, %52 : vector<128x64xf32>
    %c4_34 = arith.constant 4 : index
    %c0_35 = arith.constant 0 : index
    %54 = vector.load %arg5[%c4_34, %c0_35] : memref<12x64xf32, #tpu.memory_space<vmem>>, vector<1x64xf32>
    %55 = vector.broadcast %54 : vector<1x64xf32> to vector<128x64xf32>
    %56 = arith.addf %53, %55 : vector<128x64xf32>
    %cst_36 = arith.constant 0.000000e+00 : f32
    %57 = vector.broadcast %cst_36 : f32 to vector<128x64xf32>
    %58 = arith.maximumf %56, %57 : vector<128x64xf32>
    %c5 = arith.constant 5 : index
    %c0_37 = arith.constant 0 : index
    %c0_38 = arith.constant 0 : index
    %59 = vector.load %arg4[%c5, %c0_37, %c0_38] : memref<11x64x64xf32, #tpu.memory_space<vmem>>, vector<1x64x64xf32>
    %60 = vector.shape_cast %59 : vector<1x64x64xf32> to vector<64x64xf32>
    %cst_39 = arith.constant dense<0.000000e+00> : vector<128x64xf32>
    %61 = tpu.matmul %58, %60, %cst_39 {dimension_numbers = #tpu.dot_dimension_numbers<[1], [0], [0], [1], [0, 0, 1, 1], [], []>} : vector<128x64xf32>, vector<64x64xf32>, vector<128x64xf32> -> vector<128x64xf32>
    %c5_40 = arith.constant 5 : index
    %c0_41 = arith.constant 0 : index
    %62 = vector.load %arg5[%c5_40, %c0_41] : memref<12x64xf32, #tpu.memory_space<vmem>>, vector<1x64xf32>
    %63 = vector.broadcast %62 : vector<1x64xf32> to vector<128x64xf32>
    %64 = arith.addf %61, %63 : vector<128x64xf32>
    %cst_42 = arith.constant 0.000000e+00 : f32
    %65 = vector.broadcast %cst_42 : f32 to vector<128x64xf32>
    %66 = arith.maximumf %64, %65 : vector<128x64xf32>
    %c0_43 = arith.constant 0 : index
    %c0_44 = arith.constant 0 : index
    %67 = vector.load %arg3[%c0_43, %c0_44] : memref<16x128xf32, #tpu.memory_space<vmem>>, vector<16x128xf32>
    %68 = vector.broadcast %45 : vector<128x1xf32> to vector<128x64xf32>
    %69 = arith.mulf %66, %68 : vector<128x64xf32>
    %cst_45 = arith.constant dense<0.000000e+00> : vector<16x64xf32>
    %70 = tpu.matmul %67, %69, %cst_45 {dimension_numbers = #tpu.dot_dimension_numbers<[1], [0], [0], [1], [0, 0, 1, 1], [], []>} : vector<16x128xf32>, vector<128x64xf32>, vector<16x64xf32> -> vector<16x64xf32>
    %cst_46 = arith.constant dense<0.000000e+00> : vector<16x1xf32>
    %71 = tpu.matmul %67, %45, %cst_46 {dimension_numbers = #tpu.dot_dimension_numbers<[1], [0], [0], [1], [0, 0, 1, 1], [], []>} : vector<16x128xf32>, vector<128x1xf32>, vector<16x1xf32> -> vector<16x1xf32>
    %c6 = arith.constant 6 : index
    %c0_47 = arith.constant 0 : index
    %c0_48 = arith.constant 0 : index
    %72 = vector.load %arg4[%c6, %c0_47, %c0_48] : memref<11x64x64xf32, #tpu.memory_space<vmem>>, vector<1x64x64xf32>
    %73 = vector.shape_cast %72 : vector<1x64x64xf32> to vector<64x64xf32>
    %cst_49 = arith.constant dense<0.000000e+00> : vector<16x64xf32>
    %74 = tpu.matmul %70, %73, %cst_49 {dimension_numbers = #tpu.dot_dimension_numbers<[1], [0], [0], [1], [0, 0, 1, 1], [], []>} : vector<16x64xf32>, vector<64x64xf32>, vector<16x64xf32> -> vector<16x64xf32>
    %c6_50 = arith.constant 6 : index
    %c0_51 = arith.constant 0 : index
    %75 = vector.load %arg5[%c6_50, %c0_51] : memref<12x64xf32, #tpu.memory_space<vmem>>, vector<1x64xf32>
    %76 = vector.broadcast %71 : vector<16x1xf32> to vector<16x64xf32>
    %77 = vector.broadcast %75 : vector<1x64xf32> to vector<16x64xf32>
    %78 = arith.mulf %76, %77 : vector<16x64xf32>
    %79 = arith.addf %74, %78 : vector<16x64xf32>
    %c7 = arith.constant 7 : index
    %c0_52 = arith.constant 0 : index
    %c0_53 = arith.constant 0 : index
    %80 = vector.load %arg4[%c7, %c0_52, %c0_53] : memref<11x64x64xf32, #tpu.memory_space<vmem>>, vector<1x64x64xf32>
    %81 = vector.shape_cast %80 : vector<1x64x64xf32> to vector<64x64xf32>
    %cst_54 = arith.constant dense<0.000000e+00> : vector<16x64xf32>
    %82 = tpu.matmul %79, %81, %cst_54 {dimension_numbers = #tpu.dot_dimension_numbers<[1], [0], [0], [1], [0, 0, 1, 1], [], []>} : vector<16x64xf32>, vector<64x64xf32>, vector<16x64xf32> -> vector<16x64xf32>
    %c7_55 = arith.constant 7 : index
    %c0_56 = arith.constant 0 : index
    %83 = vector.load %arg5[%c7_55, %c0_56] : memref<12x64xf32, #tpu.memory_space<vmem>>, vector<1x64xf32>
    %84 = vector.broadcast %83 : vector<1x64xf32> to vector<16x64xf32>
    %85 = arith.addf %82, %84 : vector<16x64xf32>
    %cst_57 = arith.constant 0.000000e+00 : f32
    %86 = vector.broadcast %cst_57 : f32 to vector<16x64xf32>
    %87 = arith.maximumf %85, %86 : vector<16x64xf32>
    %c8 = arith.constant 8 : index
    %c0_58 = arith.constant 0 : index
    %c0_59 = arith.constant 0 : index
    %88 = vector.load %arg4[%c8, %c0_58, %c0_59] : memref<11x64x64xf32, #tpu.memory_space<vmem>>, vector<1x64x64xf32>
    %89 = vector.shape_cast %88 : vector<1x64x64xf32> to vector<64x64xf32>
    %cst_60 = arith.constant dense<0.000000e+00> : vector<16x64xf32>
    %90 = tpu.matmul %87, %89, %cst_60 {dimension_numbers = #tpu.dot_dimension_numbers<[1], [0], [0], [1], [0, 0, 1, 1], [], []>} : vector<16x64xf32>, vector<64x64xf32>, vector<16x64xf32> -> vector<16x64xf32>
    %c8_61 = arith.constant 8 : index
    %c0_62 = arith.constant 0 : index
    %91 = vector.load %arg5[%c8_61, %c0_62] : memref<12x64xf32, #tpu.memory_space<vmem>>, vector<1x64xf32>
    %92 = vector.broadcast %91 : vector<1x64xf32> to vector<16x64xf32>
    %93 = arith.addf %90, %92 : vector<16x64xf32>
    %cst_63 = arith.constant 0.000000e+00 : f32
    %94 = vector.broadcast %cst_63 : f32 to vector<16x64xf32>
    %95 = arith.maximumf %93, %94 : vector<16x64xf32>
    %c9 = arith.constant 9 : index
    %c0_64 = arith.constant 0 : index
    %c0_65 = arith.constant 0 : index
    %96 = vector.load %arg4[%c9, %c0_64, %c0_65] : memref<11x64x64xf32, #tpu.memory_space<vmem>>, vector<1x64x64xf32>
    %97 = vector.shape_cast %96 : vector<1x64x64xf32> to vector<64x64xf32>
    %cst_66 = arith.constant dense<0.000000e+00> : vector<16x64xf32>
    %98 = tpu.matmul %95, %97, %cst_66 {dimension_numbers = #tpu.dot_dimension_numbers<[1], [0], [0], [1], [0, 0, 1, 1], [], []>} : vector<16x64xf32>, vector<64x64xf32>, vector<16x64xf32> -> vector<16x64xf32>
    %c9_67 = arith.constant 9 : index
    %c0_68 = arith.constant 0 : index
    %99 = vector.load %arg5[%c9_67, %c0_68] : memref<12x64xf32, #tpu.memory_space<vmem>>, vector<1x64xf32>
    %100 = vector.broadcast %99 : vector<1x64xf32> to vector<16x64xf32>
    %101 = arith.addf %98, %100 : vector<16x64xf32>
    %cst_69 = arith.constant 0.000000e+00 : f32
    %102 = vector.broadcast %cst_69 : f32 to vector<16x64xf32>
    %103 = arith.maximumf %101, %102 : vector<16x64xf32>
    %c10 = arith.constant 10 : index
    %c0_70 = arith.constant 0 : index
    %c0_71 = arith.constant 0 : index
    %104 = vector.load %arg4[%c10, %c0_70, %c0_71] : memref<11x64x64xf32, #tpu.memory_space<vmem>>, vector<1x64x64xf32>
    %105 = vector.shape_cast %104 : vector<1x64x64xf32> to vector<64x64xf32>
    %cst_72 = arith.constant dense<0.000000e+00> : vector<16x64xf32>
    %106 = tpu.matmul %103, %105, %cst_72 {dimension_numbers = #tpu.dot_dimension_numbers<[1], [0], [0], [1], [0, 0, 1, 1], [], []>} : vector<16x64xf32>, vector<64x64xf32>, vector<16x64xf32> -> vector<16x64xf32>
    %c10_73 = arith.constant 10 : index
    %c0_74 = arith.constant 0 : index
    %107 = vector.load %arg5[%c10_73, %c0_74] : memref<12x64xf32, #tpu.memory_space<vmem>>, vector<1x64xf32>
    %108 = vector.broadcast %107 : vector<1x64xf32> to vector<16x64xf32>
    %109 = arith.addf %106, %108 : vector<16x64xf32>
    %c0_75 = arith.constant 0 : index
    %c0_76 = arith.constant 0 : index
    %110 = vector.load %arg7[%c0_75, %c0_76] : memref<16x64xf32, #tpu.memory_space<vmem>>, vector<16x64xf32>
    tpu.vector_store %arg7[%c0_75, %c0_76], %109 {strides = array<i32>} : memref<16x64xf32, #tpu.memory_space<vmem>>, vector<16x64xf32>,
    return
  }
}

</mosaic_0001>

<llo_original>
// kernel: gnn_branch.1
$region0: #{gnn_branch.1}
  #allocation0 [shape = 'u32[]', space=smem, size = 0x4, offset = 0x4, fixed_abs, tag = 'smem constant byte address 0x4 - core index']
  #allocation1 [shape = 'u32[144,128]{1,0:T(1,128)}', space=vmem, size = 0x12000, scoped, tag = 'internal scratch']
  #allocation2 [shape = 'f32[1]{0:T(128)S(6)}', space=smem, size = 0x200, scoped, tag = 'scoped memory for gnn_branch.1']
  %s0 = inlined_call_operand.vmem [shape: f32[16,64], index: 0, kind: input, shape index: {}]
  %s1 = inlined_call_operand.vmem [shape: f32[16,64], index: 1, kind: input, shape index: {}]
  %s2 = inlined_call_operand.vmem [shape: f32[128,16], index: 2, kind: input, shape index: {}]
  %s3 = inlined_call_operand.vmem [shape: f32[16,128], index: 3, kind: input, shape index: {}]
  %s4 = inlined_call_operand.hbm [shape: f32[11,64,64], index: 4, kind: input, shape index: {}]
  %s5 = inlined_call_operand.vmem [shape: f32[12,64], index: 5, kind: input, shape index: {}]
  %s6 = inlined_call_operand.<no memory space> [shape: f32[1], index: 6, kind: input, shape index: {}]
  %s7 = inlined_call_operand.vmem [shape: f32[16,64], index: 7, kind: output, shape index: {}]
  %s8 = sld [smem:[#allocation0]]
  $region42: #{gnn_branch.1} parent=0
    _
  %s10 = ssub.s32 1, %s8
  %s11 = scalar_select 0, %s10, %s8
  %12 = sst [smem:[#allocation2]] %s6
  $region1: #{gnn_branch.1} parent=0
    #allocation3 [shape = 'u8[360448]{0}', space=vmem, size = 0x58000, scoped, tag = 'input window, operand 4, single buffered']
    #allocation4 [shape = 's32[1]{0}', space=sflag, size = 0x4, scoped, tag = 'scoped memory for gnn_branch.1']
    %13 = vsyncpa [#allocation4], 0
    // Predicated region
    $region2: #{gnn_branch.1} parent=1 // pred_check
      _
    $region3: #{gnn_branch.1} parent=1 // pred_check_branch
      %15 = sbr.rel (0) target = $region5
    $region4: #{gnn_branch.1} parent=1 // pred_region
      _
    $region5: #{gnn_branch.1} parent=1 // pred_fallthru
      _
    // Predicated region
    $region6: #{gnn_branch.1} parent=1 // pred_check
      _
    $region7: #{gnn_branch.1} parent=1 // pred_check_branch
      %17 = sbr.rel (0) target = $region9
    $region8: #{gnn_branch.1} parent=1 // pred_region
      _
    $region9: #{gnn_branch.1} parent=1 // pred_fallthru
      _
    // Predicated region
    $region10: #{gnn_branch.1} parent=1 // pred_check
      _
    $region11: #{gnn_branch.1} parent=1 // pred_check_branch
      %19 = sbr.rel (0) target = $region13
    $region12: #{gnn_branch.1} parent=1 // pred_region
      _
    $region13: #{gnn_branch.1} parent=1 // pred_fallthru
      _
    // Predicated region
    $region14: #{gnn_branch.1} parent=1 // pred_check
      _
    $region15: #{gnn_branch.1} parent=1 // pred_check_branch
      %21 = sbr.rel (0) target = $region17
    $region16: #{gnn_branch.1} parent=1 // pred_region
      _
    $region17: #{gnn_branch.1} parent=1 // pred_fallthru
      _
    // Predicated region
    $region18: #{gnn_branch.1} parent=1 // pred_check
      _
    $region19: #{gnn_branch.1} parent=1 // pred_check_branch
      %23 = sbr.rel (0) target = $region21
    $region20: #{gnn_branch.1} parent=1 // pred_region
      %s25 = ssub.s32 11264, 11264
      %26 = vsyncadd [#allocation4], %s25
      %s27 = sshll.u32 [#allocation3], 4
      %s28 = int_to_ptr.vmem [resolvable:$true] %s27
      %33 = dma.hbm_to_vmem [thread:$0]  %s4, 11264, %s28, [#allocation4], 128, 128, 8
    $region21: #{gnn_branch.1} parent=1 // pred_fallthru
      _
    // Predicated region
    $region22: #{gnn_branch.1} parent=1 // pred_check
      _
    $region23: #{gnn_branch.1} parent=1 // pred_check_branch
      %35 = sbr.rel (0) target = $region25
    $region24: #{gnn_branch.1} parent=1 // pred_region
      _
    $region25: #{gnn_branch.1} parent=1 // pred_fallthru
      _
    // Predicated region
    $region26: #{gnn_branch.1} parent=1 // pred_check
      _
    $region27: #{gnn_branch.1} parent=1 // pred_check_branch
      %37 = sbr.rel (0) target = $region29
    $region28: #{gnn_branch.1} parent=1 // pred_region
      _
    $region29: #{gnn_branch.1} parent=1 // pred_fallthru
      _
    // Predicated region
    $region30: #{gnn_branch.1} parent=1 // pred_check
      _
    $region31: #{gnn_branch.1} parent=1 // pred_check_branch
      %39 = sbr.rel (0) target = $region33
    $region32: #{gnn_branch.1} parent=1 // pred_region
      %40 = dma.done [#allocation4], 11264
    $region33: #{gnn_branch.1} parent=1 // pred_fallthru
      _
    %v41 = vld [vmem:[%s0] sm:$0xff]
    %v42 = vld [vmem:[%s0 + $0x8] sm:$0xff]
    %v43 = vld [vmem:[#allocation3] sm:$0xff]
    %v44 = vld [vmem:[#allocation3 + $0x8] sm:$0xff]
    %v45 = vld [vmem:[#allocation3 + $0x10] sm:$0xff]
    %v46 = vld [vmem:[#allocation3 + $0x18] sm:$0xff]
    %v47 = vld [vmem:[#allocation3 + $0x20] sm:$0xff]
    %v48 = vld [vmem:[#allocation3 + $0x28] sm:$0xff]
    %v49 = vld [vmem:[#allocation3 + $0x30] sm:$0xff]
    %v50 = vld [vmem:[#allocation3 + $0x38] sm:$0xff]
    %v51 = vld [vmem:[%s5] sm:$0x1]
    %v52 = vlaneseq
    %v53 = vshrl.u32 %v52, 7
    %v54 = vsub.s32 0, %v53
    %v55 = vrot.slane %v51, %v54
    %vm56 = vcmask 523264
    %v58 = vsel %vm56, %v41, 0
    %v61 = vsel %vm56, %v42, 0
    %63 = vmatprep.subr.mxu0 0.0
    %64 = vmatpush1.msra.mxu0 %v43
    %65 = vmatprep.subr.mxu0 0.0
    %66 = vmatpush1.msra.mxu0 %v44
    %67 = vmatprep.subr.mxu0 0.0
    %68 = vmatpush1.msra.mxu0 %v45
    %69 = vmatprep.subr.mxu0 0.0
    %70 = vmatpush1.msra.mxu0 %v46
    %71 = vmatprep.subr.mxu0 0.0
    %72 = vmatpush1.msra.mxu0 %v47
    %73 = vmatprep.subr.mxu0 0.0
    %74 = vmatpush1.msra.mxu0 %v48
    %75 = vmatprep.subr.mxu0 0.0
    %76 = vmatpush1.msra.mxu0 %v49
    %77 = vmatprep.subr.mxu0 0.0
    %78 = vmatpush1.msra.mxu0 %v50
    %79 = vmatprep.subr.mxu0 0.0
    %80 = vmatpush1.msra.mxu0 0.0
    %81 = vmatprep.subr.mxu0 0.0
    %82 = vmatpush1.msra.mxu0 0.0
    %83 = vmatprep.subr.mxu0 0.0
    %84 = vmatpush1.msra.mxu0 0.0
    %85 = vmatprep.subr.mxu0 0.0
    %86 = vmatpush1.msra.mxu0 0.0
    %87 = vmatprep.subr.mxu0 0.0
    %88 = vmatpush1.msra.mxu0 0.0
    %89 = vmatprep.subr.mxu0 0.0
    %90 = vmatpush1.msra.mxu0 0.0
    %91 = vmatprep.subr.mxu0 0.0
    %92 = vmatpush1.msra.mxu0 0.0
    %93 = vmatprep.subr.mxu0 0.0
    %94 = vmatpush1.msra.mxu0 0.0
    %95 = vmatprep.subr.mxu0 0.0
    %96 = vmatpush1.msra.mxu0 0.0
    %97 = vmatprep.subr.mxu0 0.0
    %98 = vmatpush1.msra.mxu0 0.0
    %99 = vmatprep.subr.mxu0 0.0
    %100 = vmatpush1.msra.mxu0 0.0
    %101 = vmatprep.subr.mxu0 0.0
    %102 = vmatpush1.msra.mxu0 0.0
    %103 = vmatprep.subr.mxu0 0.0
    %104 = vmatpush1.msra.mxu0 0.0
    %105 = vmatprep.subr.mxu0 0.0
    %106 = vmatpush1.msra.mxu0 0.0
    %107 = vmatprep.subr.mxu0 0.0
    %108 = vmatpush1.msra.mxu0 0.0
    %109 = vmatprep.subr.mxu0 0.0
    %110 = vmatpush1.msra.mxu0 0.0
    %111 = vmatprep.subr.mxu0 0.0
    %112 = vmatpush1.msra.mxu0 0.0
    %113 = vmatprep.subr.mxu0 0.0
    %114 = vmatpush1.msra.mxu0 0.0
    %115 = vmatprep.subr.mxu0 0.0
    %116 = vmatpush1.msra.mxu0 0.0
    %117 = vmatprep.subr.mxu0 0.0
    %118 = vmatpush1.msra.mxu0 0.0
    %119 = vmatprep.subr.mxu0 0.0
    %120 = vmatpush1.msra.mxu0 0.0
    %121 = vmatprep.subr.mxu0 0.0
    %122 = vmatpush1.msra.mxu0 0.0
    %123 = vmatprep.subr.mxu0 0.0
    %124 = vmatpush1.msra.mxu0 0.0
    %125 = vmatprep.subr.mxu0 0.0
    %126 = vmatpush1.msra.mxu0 0.0
    %127 = vmatprep.mubr.f32.mxu0 0.0
    %128 = vmatmul.mubr.f32.gmra.mrb[0].mxu0 %v58
    %v129 = vpop.f32.mrb[0].mxu0
    %v130 = vadd.f32 %v55, %v129
    %v131 = vpop.f32.mrb[0].mxu0
    %132 = vmatprep.mubr.f32.mxu0 0.0
    %133 = vmatmul.mubr.f32.gmra.mrb[0].mxu0 %v61
    %v134 = vpop.f32.mrb[0].mxu0
    %v135 = vadd.f32 %v55, %v134
    %v136 = vpop.f32.mrb[0].mxu0
    %137 = vdwg.mxu0
    %v138 = vmax.f32 %v130, 0.0
    %v139 = vmax.f32 %v135, 0.0
    %s140 = scalar_lea.vmem [#allocation3], 64
    %v141 = vld [vmem:[%s140] sm:$0xff]
    %v142 = vld [vmem:[%s140 + $0x8] sm:$0xff]
    %v143 = vld [vmem:[%s140 + $0x10] sm:$0xff]
    %v144 = vld [vmem:[%s140 + $0x18] sm:$0xff]
    %v145 = vld [vmem:[%s140 + $0x20] sm:$0xff]
    %v146 = vld [vmem:[%s140 + $0x28] sm:$0xff]
    %v147 = vld [vmem:[%s140 + $0x30] sm:$0xff]
    %v148 = vld [vmem:[%s140 + $0x38] sm:$0xff]
    %v149 = vld [vmem:[%s5 + $0x1] sm:$0x1]
    %v150 = vlaneseq
    %v151 = vshrl.u32 %v150, 7
    %v152 = vsub.s32 0, %v151
    %v153 = vrot.slane %v149, %v152
    %v155 = vsel %vm56, %v138, 0
    %v158 = vsel %vm56, %v139, 0
    %160 = vmatprep.subr.mxu0 0.0
    %161 = vmatpush1.msra.mxu0 %v141
    %162 = vmatprep.subr.mxu0 0.0
    %163 = vmatpush1.msra.mxu0 %v142
    %164 = vmatprep.subr.mxu0 0.0
    %165 = vmatpush1.msra.mxu0 %v143
    %166 = vmatprep.subr.mxu0 0.0
    %167 = vmatpush1.msra.mxu0 %v144
    %168 = vmatprep.subr.mxu0 0.0
    %169 = vmatpush1.msra.mxu0 %v145
    %170 = vmatprep.subr.mxu0 0.0
    %171 = vmatpush1.msra.mxu0 %v146
    %172 = vmatprep.subr.mxu0 0.0
    %173 = vmatpush1.msra.mxu0 %v147
    %174 = vmatprep.subr.mxu0 0.0
    %175 = vmatpush1.msra.mxu0 %v148
    %176 = vmatprep.subr.mxu0 0.0
    %177 = vmatpush1.msra.mxu0 0.0
    %178 = vmatprep.subr.mxu0 0.0
    %179 = vmatpush1.msra.mxu0 0.0
    %180 = vmatprep.subr.mxu0 0.0
    %181 = vmatpush1.msra.mxu0 0.0
    %182 = vmatprep.subr.mxu0 0.0
    %183 = vmatpush1.msra.mxu0 0.0
    %184 = vmatprep.subr.mxu0 0.0
    %185 = vmatpush1.msra.mxu0 0.0
    %186 = vmatprep.subr.mxu0 0.0
    %187 = vmatpush1.msra.mxu0 0.0
    %188 = vmatprep.subr.mxu0 0.0
    %189 = vmatpush1.msra.mxu0 0.0
    %190 = vmatprep.subr.mxu0 0.0
    %191 = vmatpush1.msra.mxu0 0.0
    %192 = vmatprep.subr.mxu0 0.0
    %193 = vmatpush1.msra.mxu0 0.0
    %194 = vmatprep.subr.mxu0 0.0
    %195 = vmatpush1.msra.mxu0 0.0
    %196 = vmatprep.subr.mxu0 0.0
    %197 = vmatpush1.msra.mxu0 0.0
    %198 = vmatprep.subr.mxu0 0.0
    %199 = vmatpush1.msra.mxu0 0.0
    %200 = vmatprep.subr.mxu0 0.0
    %201 = vmatpush1.msra.mxu0 0.0
    %202 = vmatprep.subr.mxu0 0.0
    %203 = vmatpush1.msra.mxu0 0.0
    %204 = vmatprep.subr.mxu0 0.0
    %205 = vmatpush1.msra.mxu0 0.0
    %206 = vmatprep.subr.mxu0 0.0
    %207 = vmatpush1.msra.mxu0 0.0
    %208 = vmatprep.subr.mxu0 0.0
    %209 = vmatpush1.msra.mxu0 0.0
    %210 = vmatprep.subr.mxu0 0.0
    %211 = vmatpush1.msra.mxu0 0.0
    %212 = vmatprep.subr.mxu0 0.0
    %213 = vmatpush1.msra.mxu0 0.0
    %214 = vmatprep.subr.mxu0 0.0
    %215 = vmatpush1.msra.mxu0 0.0
    %216 = vmatprep.subr.mxu0 0.0
    %217 = vmatpush1.msra.mxu0 0.0
    %218 = vmatprep.subr.mxu0 0.0
    %219 = vmatpush1.msra.mxu0 0.0
    %220 = vmatprep.subr.mxu0 0.0
    %221 = vmatpush1.msra.mxu0 0.0
    %222 = vmatprep.subr.mxu0 0.0
    %223 = vmatpush1.msra.mxu0 0.0
    %224 = vmatprep.mubr.f32.mxu0 0.0
    %225 = vmatmul.mubr.f32.gmra.mrb[0].mxu0 %v155
    %v226 = vpop.f32.mrb[0].mxu0
    %v227 = vadd.f32 %v153, %v226
    %v228 = vpop.f32.mrb[0].mxu0
    %229 = vmatprep.mubr.f32.mxu0 0.0
    %230 = vmatmul.mubr.f32.gmra.mrb[0].mxu0 %v158
    %v231 = vpop.f32.mrb[0].mxu0
    %v232 = vadd.f32 %v153, %v231
    %v233 = vpop.f32.mrb[0].mxu0
    %234 = vdwg.mxu0
    %v235 = vmax.f32 %v227, 0.0
    %v236 = vmax.f32 %v232, 0.0
    %s237 = scalar_lea.vmem [#allocation3], 128
    %v238 = vld [vmem:[%s237] sm:$0xff]
    %v239 = vld [vmem:[%s237 + $0x8] sm:$0xff]
    %v240 = vld [vmem:[%s237 + $0x10] sm:$0xff]
    %v241 = vld [vmem:[%s237 + $0x18] sm:$0xff]
    %v242 = vld [vmem:[%s237 + $0x20] sm:$0xff]
    %v243 = vld [vmem:[%s237 + $0x28] sm:$0xff]
    %v244 = vld [vmem:[%s237 + $0x30] sm:$0xff]
    %v245 = vld [vmem:[%s237 + $0x38] sm:$0xff]
    %v246 = vld [vmem:[%s5 + $0x2] sm:$0x1]
    %v247 = vlaneseq
    %v248 = vshrl.u32 %v247, 7
    %v249 = vsub.s32 0, %v248
    %v250 = vrot.slane %v246, %v249
    %v252 = vsel %vm56, %v235, 0
    %v255 = vsel %vm56, %v236, 0
    %257 = vmatprep.subr.mxu0 0.0
    %258 = vmatpush1.msra.mxu0 %v238
    %259 = vmatprep.subr.mxu0 0.0
    %260 = vmatpush1.msra.mxu0 %v239
    %261 = vmatprep.subr.mxu0 0.0
    %262 = vmatpush1.msra.mxu0 %v240
    %263 = vmatprep.subr.mxu0 0.0
    %264 = vmatpush1.msra.mxu0 %v241
    %265 = vmatprep.subr.mxu0 0.0
    %266 = vmatpush1.msra.mxu0 %v242
    %267 = vmatprep.subr.mxu0 0.0
    %268 = vmatpush1.msra.mxu0 %v243
    %269 = vmatprep.subr.mxu0 0.0
    %270 = vmatpush1.msra.mxu0 %v244
    %271 = vmatprep.subr.mxu0 0.0
    %272 = vmatpush1.msra.mxu0 %v245
    %273 = vmatprep.subr.mxu0 0.0
    %274 = vmatpush1.msra.mxu0 0.0
    %275 = vmatprep.subr.mxu0 0.0
    %276 = vmatpush1.msra.mxu0 0.0
    %277 = vmatprep.subr.mxu0 0.0
    %278 = vmatpush1.msra.mxu0 0.0
    %279 = vmatprep.subr.mxu0 0.0
    %280 = vmatpush1.msra.mxu0 0.0
    %281 = vmatprep.subr.mxu0 0.0
    %282 = vmatpush1.msra.mxu0 0.0
    %283 = vmatprep.subr.mxu0 0.0
    %284 = vmatpush1.msra.mxu0 0.0
    %285 = vmatprep.subr.mxu0 0.0
    %286 = vmatpush1.msra.mxu0 0.0
    %287 = vmatprep.subr.mxu0 0.0
    %288 = vmatpush1.msra.mxu0 0.0
    %289 = vmatprep.subr.mxu0 0.0
    %290 = vmatpush1.msra.mxu0 0.0
    %291 = vmatprep.subr.mxu0 0.0
    %292 = vmatpush1.msra.mxu0 0.0
    %293 = vmatprep.subr.mxu0 0.0
    %294 = vmatpush1.msra.mxu0 0.0
    %295 = vmatprep.subr.mxu0 0.0
    %296 = vmatpush1.msra.mxu0 0.0
    %297 = vmatprep.subr.mxu0 0.0
    %298 = vmatpush1.msra.mxu0 0.0
    %299 = vmatprep.subr.mxu0 0.0
    %300 = vmatpush1.msra.mxu0 0.0
    %301 = vmatprep.subr.mxu0 0.0
    %302 = vmatpush1.msra.mxu0 0.0
    %303 = vmatprep.subr.mxu0 0.0
    %304 = vmatpush1.msra.mxu0 0.0
    %305 = vmatprep.subr.mxu0 0.0
    %306 = vmatpush1.msra.mxu0 0.0
    %307 = vmatprep.subr.mxu0 0.0
    %308 = vmatpush1.msra.mxu0 0.0
    %309 = vmatprep.subr.mxu0 0.0
    %310 = vmatpush1.msra.mxu0 0.0
    %311 = vmatprep.subr.mxu0 0.0
    %312 = vmatpush1.msra.mxu0 0.0
    %313 = vmatprep.subr.mxu0 0.0
    %314 = vmatpush1.msra.mxu0 0.0
    %315 = vmatprep.subr.mxu0 0.0
    %316 = vmatpush1.msra.mxu0 0.0
    %317 = vmatprep.subr.mxu0 0.0
    %318 = vmatpush1.msra.mxu0 0.0
    %319 = vmatprep.subr.mxu0 0.0
    %320 = vmatpush1.msra.mxu0 0.0
    %321 = vmatprep.mubr.f32.mxu0 0.0
    %322 = vmatmul.mubr.f32.gmra.mrb[0].mxu0 %v252
    %v323 = vpop.f32.mrb[0].mxu0
    %v324 = vadd.f32 %v250, %v323
    %v325 = vpop.f32.mrb[0].mxu0
    %326 = vmatprep.mubr.f32.mxu0 0.0
    %327 = vmatmul.mubr.f32.gmra.mrb[0].mxu0 %v255
    %v328 = vpop.f32.mrb[0].mxu0
    %v329 = vadd.f32 %v250, %v328
    %v330 = vpop.f32.mrb[0].mxu0
    %331 = vdwg.mxu0
    %v332 = vmax.f32 %v324, 0.0
    %v333 = vmax.f32 %v329, 0.0
    %s334 = scalar_lea.vmem [#allocation3], 192
    %v335 = vld [vmem:[%s334] sm:$0xff]
    %v336 = vld [vmem:[%s334 + $0x8] sm:$0xff]
    %v337 = vld [vmem:[%s334 + $0x10] sm:$0xff]
    %v338 = vld [vmem:[%s334 + $0x18] sm:$0xff]
    %v339 = vld [vmem:[%s334 + $0x20] sm:$0xff]
    %v340 = vld [vmem:[%s334 + $0x28] sm:$0xff]
    %v341 = vld [vmem:[%s334 + $0x30] sm:$0xff]
    %v342 = vld [vmem:[%s334 + $0x38] sm:$0xff]
    %v343 = vld [vmem:[%s5 + $0x3] sm:$0x1]
    %v344 = vlaneseq
    %v345 = vshrl.u32 %v344, 7
    %v346 = vsub.s32 0, %v345
    %v347 = vrot.slane %v343, %v346
    %v349 = vsel %vm56, %v332, 0
    %v352 = vsel %vm56, %v333, 0
    %354 = vmatprep.subr.mxu0 0.0
    %355 = vmatpush1.msra.mxu0 %v335
    %356 = vmatprep.subr.mxu0 0.0
    %357 = vmatpush1.msra.mxu0 %v336
    %358 = vmatprep.subr.mxu0 0.0
    %359 = vmatpush1.msra.mxu0 %v337
    %360 = vmatprep.subr.mxu0 0.0
    %361 = vmatpush1.msra.mxu0 %v338
    %362 = vmatprep.subr.mxu0 0.0
    %363 = vmatpush1.msra.mxu0 %v339
    %364 = vmatprep.subr.mxu0 0.0
    %365 = vmatpush1.msra.mxu0 %v340
    %366 = vmatprep.subr.mxu0 0.0
    %367 = vmatpush1.msra.mxu0 %v341
    %368 = vmatprep.subr.mxu0 0.0
    %369 = vmatpush1.msra.mxu0 %v342
    %370 = vmatprep.subr.mxu0 0.0
    %371 = vmatpush1.msra.mxu0 0.0
    %372 = vmatprep.subr.mxu0 0.0
    %373 = vmatpush1.msra.mxu0 0.0
    %374 = vmatprep.subr.mxu0 0.0
    %375 = vmatpush1.msra.mxu0 0.0
    %376 = vmatprep.subr.mxu0 0.0
    %377 = vmatpush1.msra.mxu0 0.0
    %378 = vmatprep.subr.mxu0 0.0
    %379 = vmatpush1.msra.mxu0 0.0
    %380 = vmatprep.subr.mxu0 0.0
    %381 = vmatpush1.msra.mxu0 0.0
    %382 = vmatprep.subr.mxu0 0.0
    %383 = vmatpush1.msra.mxu0 0.0
    %384 = vmatprep.subr.mxu0 0.0
    %385 = vmatpush1.msra.mxu0 0.0
    %386 = vmatprep.subr.mxu0 0.0
    %387 = vmatpush1.msra.mxu0 0.0
    %388 = vmatprep.subr.mxu0 0.0
    %389 = vmatpush1.msra.mxu0 0.0
    %390 = vmatprep.subr.mxu0 0.0
    %391 = vmatpush1.msra.mxu0 0.0
    %392 = vmatprep.subr.mxu0 0.0
    %393 = vmatpush1.msra.mxu0 0.0
    %394 = vmatprep.subr.mxu0 0.0
    %395 = vmatpush1.msra.mxu0 0.0
    %396 = vmatprep.subr.mxu0 0.0
    %397 = vmatpush1.msra.mxu0 0.0
    %398 = vmatprep.subr.mxu0 0.0
    %399 = vmatpush1.msra.mxu0 0.0
    %400 = vmatprep.subr.mxu0 0.0
    %401 = vmatpush1.msra.mxu0 0.0
    %402 = vmatprep.subr.mxu0 0.0
    %403 = vmatpush1.msra.mxu0 0.0
    %404 = vmatprep.subr.mxu0 0.0
    %405 = vmatpush1.msra.mxu0 0.0
    %406 = vmatprep.subr.mxu0 0.0
    %407 = vmatpush1.msra.mxu0 0.0
    %408 = vmatprep.subr.mxu0 0.0
    %409 = vmatpush1.msra.mxu0 0.0
    %410 = vmatprep.subr.mxu0 0.0
    %411 = vmatpush1.msra.mxu0 0.0
    %412 = vmatprep.subr.mxu0 0.0
    %413 = vmatpush1.msra.mxu0 0.0
    %414 = vmatprep.subr.mxu0 0.0
    %415 = vmatpush1.msra.mxu0 0.0
    %416 = vmatprep.subr.mxu0 0.0
    %417 = vmatpush1.msra.mxu0 0.0
    %418 = vmatprep.mubr.f32.mxu0 0.0
    %419 = vmatmul.mubr.f32.gmra.mrb[0].mxu0 %v349
    %v420 = vpop.f32.mrb[0].mxu0
    %v421 = vadd.f32 %v347, %v420
    %v422 = vpop.f32.mrb[0].mxu0
    %423 = vmatprep.mubr.f32.mxu0 0.0
    %424 = vmatmul.mubr.f32.gmra.mrb[0].mxu0 %v352
    %v425 = vpop.f32.mrb[0].mxu0
    %v426 = vadd.f32 %v347, %v425
    %v427 = vpop.f32.mrb[0].mxu0
    %428 = vdwg.mxu0
    %v429 = vld [vmem:[%s1] sm:$0xff]
    %v430 = vld [vmem:[%s1 + $0x8] sm:$0xff]
    %v431 = vadd.f32 %v421, %v429
    %v432 = vadd.f32 %v426, %v430
    %v433 = vld [vmem:[%s2] sm:$0xff]
    %v434 = vld [vmem:[%s2 + $0x8] sm:$0xff]
    %v435 = vld [vmem:[%s2 + $0x10] sm:$0xff]
    %v436 = vld [vmem:[%s2 + $0x18] sm:$0xff]
    %v437 = vld [vmem:[%s2 + $0x20] sm:$0xff]
    %v438 = vld [vmem:[%s2 + $0x28] sm:$0xff]
    %v439 = vld [vmem:[%s2 + $0x30] sm:$0xff]
    %v440 = vld [vmem:[%s2 + $0x38] sm:$0xff]
    %v441 = vld [vmem:[%s2 + $0x40] sm:$0xff]
    %v442 = vld [vmem:[%s2 + $0x48] sm:$0xff]
    %v443 = vld [vmem:[%s2 + $0x50] sm:$0xff]
    %v444 = vld [vmem:[%s2 + $0x58] sm:$0xff]
    %v445 = vld [vmem:[%s2 + $0x60] sm:$0xff]
    %v446 = vld [vmem:[%s2 + $0x68] sm:$0xff]
    %v447 = vld [vmem:[%s2 + $0x70] sm:$0xff]
    %v448 = vld [vmem:[%s2 + $0x78] sm:$0xff]
    %vm449 = vcmask 130048
    %v451 = vsel %vm449, %v433, 0
    %v454 = vsel %vm449, %v434, 0
    %v457 = vsel %vm449, %v435, 0
    %v460 = vsel %vm449, %v436, 0
    %v463 = vsel %vm449, %v437, 0
    %v466 = vsel %vm449, %v438, 0
    %v469 = vsel %vm449, %v439, 0
    %v472 = vsel %vm449, %v440, 0
    %v475 = vsel %vm449, %v441, 0
    %v478 = vsel %vm449, %v442, 0
    %v481 = vsel %vm449, %v443, 0
    %v484 = vsel %vm449, %v444, 0
    %v487 = vsel %vm449, %v445, 0
    %v490 = vsel %vm449, %v446, 0
    %v493 = vsel %vm449, %v447, 0
    %v496 = vsel %vm449, %v448, 0
    %498 = vmatprep.subr.mxu0 0.0
    %499 = vmatpush1.msra.mxu0 %v431
    %500 = vmatprep.subr.mxu0 0.0
    %501 = vmatpush1.msra.mxu0 %v432
    %502 = vmatprep.subr.mxu0 0.0
    %503 = vmatpush1.msra.mxu0 0.0
    %504 = vmatprep.subr.mxu0 0.0
    %505 = vmatpush1.msra.mxu0 0.0
    %506 = vmatprep.subr.mxu0 0.0
    %507 = vmatpush1.msra.mxu0 0.0
    %508 = vmatprep.subr.mxu0 0.0
    %509 = vmatpush1.msra.mxu0 0.0
    %510 = vmatprep.subr.mxu0 0.0
    %511 = vmatpush1.msra.mxu0 0.0
    %512 = vmatprep.subr.mxu0 0.0
    %513 = vmatpush1.msra.mxu0 0.0
    %514 = vmatprep.subr.mxu0 0.0
    %515 = vmatpush1.msra.mxu0 0.0
    %516 = vmatprep.subr.mxu0 0.0
    %517 = vmatpush1.msra.mxu0 0.0
    %518 = vmatprep.subr.mxu0 0.0
    %519 = vmatpush1.msra.mxu0 0.0
    %520 = vmatprep.subr.mxu0 0.0
    %521 = vmatpush1.msra.mxu0 0.0
    %522 = vmatprep.subr.mxu0 0.0
    %523 = vmatpush1.msra.mxu0 0.0
    %524 = vmatprep.subr.mxu0 0.0
    %525 = vmatpush1.msra.mxu0 0.0
    %526 = vmatprep.subr.mxu0 0.0
    %527 = vmatpush1.msra.mxu0 0.0
    %528 = vmatprep.subr.mxu0 0.0
    %529 = vmatpush1.msra.mxu0 0.0
    %530 = vmatprep.subr.mxu0 0.0
    %531 = vmatpush1.msra.mxu0 0.0
    %532 = vmatprep.subr.mxu0 0.0
    %533 = vmatpush1.msra.mxu0 0.0
    %534 = vmatprep.subr.mxu0 0.0
    %535 = vmatpush1.msra.mxu0 0.0
    %536 = vmatprep.subr.mxu0 0.0
    %537 = vmatpush1.msra.mxu0 0.0
    %538 = vmatprep.subr.mxu0 0.0
    %539 = vmatpush1.msra.mxu0 0.0
    %540 = vmatprep.subr.mxu0 0.0
    %541 = vmatpush1.msra.mxu0 0.0
    %542 = vmatprep.subr.mxu0 0.0
    %543 = vmatpush1.msra.mxu0 0.0
    %544 = vmatprep.subr.mxu0 0.0
    %545 = vmatpush1.msra.mxu0 0.0
    %546 = vmatprep.subr.mxu0 0.0
    %547 = vmatpush1.msra.mxu0 0.0
    %548 = vmatprep.subr.mxu0 0.0
    %549 = vmatpush1.msra.mxu0 0.0
    %550 = vmatprep.subr.mxu0 0.0
    %551 = vmatpush1.msra.mxu0 0.0
    %552 = vmatprep.subr.mxu0 0.0
    %553 = vmatpush1.msra.mxu0 0.0
    %554 = vmatprep.subr.mxu0 0.0
    %555 = vmatpush1.msra.mxu0 0.0
    %556 = vmatprep.subr.mxu0 0.0
    %557 = vmatpush1.msra.mxu0 0.0
    %558 = vmatprep.subr.mxu0 0.0
    %559 = vmatpush1.msra.mxu0 0.0
    %560 = vmatprep.subr.mxu0 0.0
    %561 = vmatpush1.msra.mxu0 0.0
    %562 = vmatprep.mubr.f32.mxu0 0.0
    %563 = vmatmul.mubr.f32.gmra.mrb[0].mxu0 %v451
    %v564 = vpop.f32.mrb[0].mxu0
    %v565 = vadd.f32 0.0, %v564
    %v566 = vpop.f32.mrb[0].mxu0
    %567 = vmatprep.mubr.f32.mxu0 0.0
    %568 = vmatmul.mubr.f32.gmra.mrb[0].mxu0 %v454
    %v569 = vpop.f32.mrb[0].mxu0
    %v570 = vadd.f32 0.0, %v569
    %v571 = vpop.f32.mrb[0].mxu0
    %572 = vmatprep.mubr.f32.mxu0 0.0
    %573 = vmatmul.mubr.f32.gmra.mrb[0].mxu0 %v457
    %v574 = vpop.f32.mrb[0].mxu0
    %v575 = vadd.f32 0.0, %v574
    %v576 = vpop.f32.mrb[0].mxu0
    %577 = vmatprep.mubr.f32.mxu0 0.0
    %578 = vmatmul.mubr.f32.gmra.mrb[0].mxu0 %v460
    %v579 = vpop.f32.mrb[0].mxu0
    %v580 = vadd.f32 0.0, %v579
    %v581 = vpop.f32.mrb[0].mxu0
    %582 = vmatprep.mubr.f32.mxu0 0.0
    %583 = vmatmul.mubr.f32.gmra.mrb[0].mxu0 %v463
    %v584 = vpop.f32.mrb[0].mxu0
    %v585 = vadd.f32 0.0, %v584
    %v586 = vpop.f32.mrb[0].mxu0
    %587 = vmatprep.mubr.f32.mxu0 0.0
    %588 = vmatmul.mubr.f32.gmra.mrb[0].mxu0 %v466
    %v589 = vpop.f32.mrb[0].mxu0
    %v590 = vadd.f32 0.0, %v589
    %v591 = vpop.f32.mrb[0].mxu0
    %592 = vmatprep.mubr.f32.mxu0 0.0
    %593 = vmatmul.mubr.f32.gmra.mrb[0].mxu0 %v469
    %v594 = vpop.f32.mrb[0].mxu0
    %v595 = vadd.f32 0.0, %v594
    %v596 = vpop.f32.mrb[0].mxu0
    %597 = vmatprep.mubr.f32.mxu0 0.0
    %598 = vmatmul.mubr.f32.gmra.mrb[0].mxu0 %v472
    %v599 = vpop.f32.mrb[0].mxu0
    %v600 = vadd.f32 0.0, %v599
    %v601 = vpop.f32.mrb[0].mxu0
    %602 = vmatprep.mubr.f32.mxu0 0.0
    %603 = vmatmul.mubr.f32.gmra.mrb[0].mxu0 %v475
    %v604 = vpop.f32.mrb[0].mxu0
    %v605 = vadd.f32 0.0, %v604
    %v606 = vpop.f32.mrb[0].mxu0
    %607 = vmatprep.mubr.f32.mxu0 0.0
    %608 = vmatmul.mubr.f32.gmra.mrb[0].mxu0 %v478
    %v609 = vpop.f32.mrb[0].mxu0
    %v610 = vadd.f32 0.0, %v609
    %v611 = vpop.f32.mrb[0].mxu0
    %612 = vmatprep.mubr.f32.mxu0 0.0
    %613 = vmatmul.mubr.f32.gmra.mrb[0].mxu0 %v481
    %v614 = vpop.f32.mrb[0].mxu0
    %v615 = vadd.f32 0.0, %v614
    %v616 = vpop.f32.mrb[0].mxu0
    %617 = vmatprep.mubr.f32.mxu0 0.0
    %618 = vmatmul.mubr.f32.gmra.mrb[0].mxu0 %v484
    %v619 = vpop.f32.mrb[0].mxu0
    %v620 = vadd.f32 0.0, %v619
    %v621 = vpop.f32.mrb[0].mxu0
    %622 = vmatprep.mubr.f32.mxu0 0.0
    %623 = vmatmul.mubr.f32.gmra.mrb[0].mxu0 %v487
    %v624 = vpop.f32.mrb[0].mxu0
    %v625 = vadd.f32 0.0, %v624
    %v626 = vpop.f32.mrb[0].mxu0
    %627 = vmatprep.mubr.f32.mxu0 0.0
    %628 = vmatmul.mubr.f32.gmra.mrb[0].mxu0 %v490
    %v629 = vpop.f32.mrb[0].mxu0
    %v630 = vadd.f32 0.0, %v629
    %v631 = vpop.f32.mrb[0].mxu0
    %632 = vmatprep.mubr.f32.mxu0 0.0
    %633 = vmatmul.mubr.f32.gmra.mrb[0].mxu0 %v493
    %v634 = vpop.f32.mrb[0].mxu0
    %v635 = vadd.f32 0.0, %v634
    %v636 = vpop.f32.mrb[0].mxu0
    %637 = vmatprep.mubr.f32.mxu0 0.0
    %638 = vmatmul.mubr.f32.gmra.mrb[0].mxu0 %v496
    %v639 = vpop.f32.mrb[0].mxu0
    %v640 = vadd.f32 0.0, %v639
    %v641 = vpop.f32.mrb[0].mxu0
    %642 = vdwg.mxu0
    %v643 = vmul.f32 %v565, %v565
    %v644 = vmul.f32 %v570, %v570
    %v645 = vmul.f32 %v575, %v575
    %v646 = vmul.f32 %v580, %v580
    %v647 = vmul.f32 %v585, %v585
    %v648 = vmul.f32 %v590, %v590
    %v649 = vmul.f32 %v595, %v595
    %v650 = vmul.f32 %v600, %v600
    %v651 = vmul.f32 %v605, %v605
    %v652 = vmul.f32 %v610, %v610
    %v653 = vmul.f32 %v615, %v615
    %v654 = vmul.f32 %v620, %v620
    %v655 = vmul.f32 %v625, %v625
    %v656 = vmul.f32 %v630, %v630
    %v657 = vmul.f32 %v635, %v635
    %v658 = vmul.f32 %v640, %v640
    %675 = vrot.lane.b32.xlu0 %v643, 127
    %v676 = vpop.permute.xlu0 %675
    %677 = vrot.lane.b32.xlu0 %v644, 127
    %v678 = vpop.permute.xlu0 %677
    %679 = vrot.lane.b32.xlu0 %v645, 127
    %v680 = vpop.permute.xlu0 %679
    %681 = vrot.lane.b32.xlu0 %v646, 127
    %v682 = vpop.permute.xlu0 %681
    %683 = vrot.lane.b32.xlu0 %v647, 127
    %v684 = vpop.permute.xlu0 %683
    %685 = vrot.lane.b32.xlu0 %v648, 127
    %v686 = vpop.permute.xlu0 %685
    %687 = vrot.lane.b32.xlu0 %v649, 127
    %v688 = vpop.permute.xlu0 %687
    %689 = vrot.lane.b32.xlu0 %v650, 127
    %v690 = vpop.permute.xlu0 %689
    %691 = vrot.lane.b32.xlu0 %v651, 127
    %v692 = vpop.permute.xlu0 %691
    %693 = vrot.lane.b32.xlu0 %v652, 127
    %v694 = vpop.permute.xlu0 %693
    %695 = vrot.lane.b32.xlu0 %v653, 127
    %v696 = vpop.permute.xlu0 %695
    %697 = vrot.lane.b32.xlu0 %v654, 127
    %v698 = vpop.permute.xlu0 %697
    %699 = vrot.lane.b32.xlu0 %v655, 127
    %v700 = vpop.permute.xlu0 %699
    %701 = vrot.lane.b32.xlu0 %v656, 127
    %v702 = vpop.permute.xlu0 %701
    %703 = vrot.lane.b32.xlu0 %v657, 127
    %v704 = vpop.permute.xlu0 %703
    %705 = vrot.lane.b32.xlu0 %v658, 127
    %v706 = vpop.permute.xlu0 %705
    %v723 = vadd.f32 %v643, %v676
    %v724 = vadd.f32 %v644, %v678
    %v725 = vadd.f32 %v645, %v680
    %v726 = vadd.f32 %v646, %v682
    %v727 = vadd.f32 %v647, %v684
    %v728 = vadd.f32 %v648, %v686
    %v729 = vadd.f32 %v649, %v688
    %v730 = vadd.f32 %v650, %v690
    %v731 = vadd.f32 %v651, %v692
    %v732 = vadd.f32 %v652, %v694
    %v733 = vadd.f32 %v653, %v696
    %v734 = vadd.f32 %v654, %v698
    %v735 = vadd.f32 %v655, %v700
    %v736 = vadd.f32 %v656, %v702
    %v737 = vadd.f32 %v657, %v704
    %v738 = vadd.f32 %v658, %v706
    %s739 = sld [smem:[#allocation2]]
    %v740 = vstv %s739
    %vm741 = vcmp.le.f32.partialorder %v723, %v740
    %vm742 = vcmp.le.f32.partialorder %v724, %v740
    %vm743 = vcmp.le.f32.partialorder %v725, %v740
    %vm744 = vcmp.le.f32.partialorder %v726, %v740
    %vm745 = vcmp.le.f32.partialorder %v727, %v740
    %vm746 = vcmp.le.f32.partialorder %v728, %v740
    %vm747 = vcmp.le.f32.partialorder %v729, %v740
    %vm748 = vcmp.le.f32.partialorder %v730, %v740
    %vm749 = vcmp.le.f32.partialorder %v731, %v740
    %vm750 = vcmp.le.f32.partialorder %v732, %v740
    %vm751 = vcmp.le.f32.partialorder %v733, %v740
    %vm752 = vcmp.le.f32.partialorder %v734, %v740
    %vm753 = vcmp.le.f32.partialorder %v735, %v740
    %vm754 = vcmp.le.f32.partialorder %v736, %v740
    %vm755 = vcmp.le.f32.partialorder %v737, %v740
    %vm756 = vcmp.le.f32.partialorder %v738, %v740
    %v757 = vsel %vm741, 1, 0
    %v758 = vsel %vm742, 1, 0
    %v759 = vsel %vm743, 1, 0
    %v760 = vsel %vm744, 1, 0
    %v761 = vsel %vm745, 1, 0
    %v762 = vsel %vm746, 1, 0
    %v763 = vsel %vm747, 1, 0
    %v764 = vsel %vm748, 1, 0
    %v765 = vsel %vm749, 1, 0
    %v766 = vsel %vm750, 1, 0
    %v767 = vsel %vm751, 1, 0
    %v768 = vsel %vm752, 1, 0
    %v769 = vsel %vm753, 1, 0
    %v770 = vsel %vm754, 1, 0
    %v771 = vsel %vm755, 1, 0
    %v772 = vsel %vm756, 1, 0
    %v773 = vcvt.s32.f32 %v757
    %v774 = vcvt.s32.f32 %v758
    %v775 = vcvt.s32.f32 %v759
    %v776 = vcvt.s32.f32 %v760
    %v777 = vcvt.s32.f32 %v761
    %v778 = vcvt.s32.f32 %v762
    %v779 = vcvt.s32.f32 %v763
    %v780 = vcvt.s32.f32 %v764
    %v781 = vcvt.s32.f32 %v765
    %v782 = vcvt.s32.f32 %v766
    %v783 = vcvt.s32.f32 %v767
    %v784 = vcvt.s32.f32 %v768
    %v785 = vcvt.s32.f32 %v769
    %v786 = vcvt.s32.f32 %v770
    %v787 = vcvt.s32.f32 %v771
    %v788 = vcvt.s32.f32 %v772
    %v789 = vld [vmem:[%s5 + $0xb] sm:$0x1]
    %s790 = scalar_lea.vmem [#allocation3], 256
    %v791 = vld [vmem:[%s790] sm:$0xff]
    %v792 = vld [vmem:[%s790 + $0x8] sm:$0xff]
    %v793 = vld [vmem:[%s790 + $0x10] sm:$0xff]
    %v794 = vld [vmem:[%s790 + $0x18] sm:$0xff]
    %v795 = vld [vmem:[%s790 + $0x20] sm:$0xff]
    %v796 = vld [vmem:[%s790 + $0x28] sm:$0xff]
    %v797 = vld [vmem:[%s790 + $0x30] sm:$0xff]
    %v798 = vld [vmem:[%s790 + $0x38] sm:$0xff]
    %800 = vset.pattern.permute.xlu0 62
    %801 = vperm.xlu0 %800, %v565
    %v802 = vpop.permute.xlu0 %801
    %805 = vset.pattern.permute.xlu0 62
    %806 = vperm.xlu0 %805, %v570
    %v807 = vpop.permute.xlu0 %806
    %810 = vset.pattern.permute.xlu0 62
    %811 = vperm.xlu0 %810, %v575
    %v812 = vpop.permute.xlu0 %811
    %815 = vset.pattern.permute.xlu0 62
    %816 = vperm.xlu0 %815, %v580
    %v817 = vpop.permute.xlu0 %816
    %820 = vset.pattern.permute.xlu0 62
    %821 = vperm.xlu0 %820, %v585
    %v822 = vpop.permute.xlu0 %821
    %825 = vset.pattern.permute.xlu0 62
    %826 = vperm.xlu0 %825, %v590
    %v827 = vpop.permute.xlu0 %826
    %830 = vset.pattern.permute.xlu0 62
    %831 = vperm.xlu0 %830, %v595
    %v832 = vpop.permute.xlu0 %831
    %835 = vset.pattern.permute.xlu0 62
    %836 = vperm.xlu0 %835, %v600
    %v837 = vpop.permute.xlu0 %836
    %840 = vset.pattern.permute.xlu0 62
    %841 = vperm.xlu0 %840, %v605
    %v842 = vpop.permute.xlu0 %841
    %845 = vset.pattern.permute.xlu0 62
    %846 = vperm.xlu0 %845, %v610
    %v847 = vpop.permute.xlu0 %846
    %850 = vset.pattern.permute.xlu0 62
    %851 = vperm.xlu0 %850, %v615
    %v852 = vpop.permute.xlu0 %851
    %855 = vset.pattern.permute.xlu0 62
    %856 = vperm.xlu0 %855, %v620
    %v857 = vpop.permute.xlu0 %856
    %860 = vset.pattern.permute.xlu0 62
    %861 = vperm.xlu0 %860, %v625
    %v862 = vpop.permute.xlu0 %861
    %865 = vset.pattern.permute.xlu0 62
    %866 = vperm.xlu0 %865, %v630
    %v867 = vpop.permute.xlu0 %866
    %870 = vset.pattern.permute.xlu0 62
    %871 = vperm.xlu0 %870, %v635
    %v872 = vpop.permute.xlu0 %871
    %875 = vset.pattern.permute.xlu0 62
    %876 = vperm.xlu0 %875, %v640
    %v877 = vpop.permute.xlu0 %876
    %v879 = vlaneseq
    %v880 = vshrl.u32 %v879, 7
    %v881 = vsub.s32 0, %v880
    %v882 = vrot.slane %v789, %v881
    %v883 = vmul.f32 %v802, %v882
    %v884 = vmul.f32 %v807, %v882
    %v885 = vmul.f32 %v812, %v882
    %v886 = vmul.f32 %v817, %v882
    %v887 = vmul.f32 %v822, %v882
    %v888 = vmul.f32 %v827, %v882
    %v889 = vmul.f32 %v832, %v882
    %v890 = vmul.f32 %v837, %v882
    %v891 = vmul.f32 %v842, %v882
    %v892 = vmul.f32 %v847, %v882
    %v893 = vmul.f32 %v852, %v882
    %v894 = vmul.f32 %v857, %v882
    %v895 = vmul.f32 %v862, %v882
    %v896 = vmul.f32 %v867, %v882
    %v897 = vmul.f32 %v872, %v882
    %v898 = vmul.f32 %v877, %v882
    %v899 = vsel %vm56, %v565, 0
    %v901 = vsel %vm56, %v570, 0
    %v903 = vsel %vm56, %v575, 0
    %v905 = vsel %vm56, %v580, 0
    %v907 = vsel %vm56, %v585, 0
    %v909 = vsel %vm56, %v590, 0
    %v911 = vsel %vm56, %v595, 0
    %v913 = vsel %vm56, %v600, 0
    %v915 = vsel %vm56, %v605, 0
    %v917 = vsel %vm56, %v610, 0
    %v919 = vsel %vm56, %v615, 0
    %v921 = vsel %vm56, %v620, 0
    %v923 = vsel %vm56, %v625, 0
    %v925 = vsel %vm56, %v630, 0
    %v927 = vsel %vm56, %v635, 0
    %v929 = vsel %vm56, %v640, 0
    %931 = vmatprep.subr.mxu0 0.0
    %932 = vmatpush1.msra.mxu0 %v791
    %933 = vmatprep.subr.mxu0 0.0
    %934 = vmatpush1.msra.mxu0 %v792
    %935 = vmatprep.subr.mxu0 0.0
    %936 = vmatpush1.msra.mxu0 %v793
    %937 = vmatprep.subr.mxu0 0.0
    %938 = vmatpush1.msra.mxu0 %v794
    %939 = vmatprep.subr.mxu0 0.0
    %940 = vmatpush1.msra.mxu0 %v795
    %941 = vmatprep.subr.mxu0 0.0
    %942 = vmatpush1.msra.mxu0 %v796
    %943 = vmatprep.subr.mxu0 0.0
    %944 = vmatpush1.msra.mxu0 %v797
    %945 = vmatprep.subr.mxu0 0.0
    %946 = vmatpush1.msra.mxu0 %v798
    %947 = vmatprep.subr.mxu0 0.0
    %948 = vmatpush1.msra.mxu0 0.0
    %949 = vmatprep.subr.mxu0 0.0
    %950 = vmatpush1.msra.mxu0 0.0
    %951 = vmatprep.subr.mxu0 0.0
    %952 = vmatpush1.msra.mxu0 0.0
    %953 = vmatprep.subr.mxu0 0.0
    %954 = vmatpush1.msra.mxu0 0.0
    %955 = vmatprep.subr.mxu0 0.0
    %956 = vmatpush1.msra.mxu0 0.0
    %957 = vmatprep.subr.mxu0 0.0
    %958 = vmatpush1.msra.mxu0 0.0
    %959 = vmatprep.subr.mxu0 0.0
    %960 = vmatpush1.msra.mxu0 0.0
    %961 = vmatprep.subr.mxu0 0.0
    %962 = vmatpush1.msra.mxu0 0.0
    %963 = vmatprep.subr.mxu0 0.0
    %964 = vmatpush1.msra.mxu0 0.0
    %965 = vmatprep.subr.mxu0 0.0
    %966 = vmatpush1.msra.mxu0 0.0
    %967 = vmatprep.subr.mxu0 0.0
    %968 = vmatpush1.msra.mxu0 0.0
    %969 = vmatprep.subr.mxu0 0.0
    %970 = vmatpush1.msra.mxu0 0.0
    %971 = vmatprep.subr.mxu0 0.0
    %972 = vmatpush1.msra.mxu0 0.0
    %973 = vmatprep.subr.mxu0 0.0
    %974 = vmatpush1.msra.mxu0 0.0
    %975 = vmatprep.subr.mxu0 0.0
    %976 = vmatpush1.msra.mxu0 0.0
    %977 = vmatprep.subr.mxu0 0.0
    %978 = vmatpush1.msra.mxu0 0.0
    %979 = vmatprep.subr.mxu0 0.0
    %980 = vmatpush1.msra.mxu0 0.0
    %981 = vmatprep.subr.mxu0 0.0
    %982 = vmatpush1.msra.mxu0 0.0
    %983 = vmatprep.subr.mxu0 0.0
    %984 = vmatpush1.msra.mxu0 0.0
    %985 = vmatprep.subr.mxu0 0.0
    %986 = vmatpush1.msra.mxu0 0.0
    %987 = vmatprep.subr.mxu0 0.0
    %988 = vmatpush1.msra.mxu0 0.0
    %989 = vmatprep.subr.mxu0 0.0
    %990 = vmatpush1.msra.mxu0 0.0
    %991 = vmatprep.subr.mxu0 0.0
    %992 = vmatpush1.msra.mxu0 0.0
    %993 = vmatprep.subr.mxu0 0.0
    %994 = vmatpush1.msra.mxu0 0.0
    %995 = vmatprep.mubr.f32.mxu0 0.0
    %996 = vmatmul.mubr.f32.gmra.mrb[0].mxu0 %v899
    %v997 = vpop.f32.mrb[0].mxu0
    %v998 = vadd.f32 %v883, %v997
    %v999 = vpop.f32.mrb[0].mxu0
    %1000 = vmatprep.mubr.f32.mxu0 0.0
    %1001 = vmatmul.mubr.f32.gmra.mrb[0].mxu0 %v901
    %v1002 = vpop.f32.mrb[0].mxu0
    %v1003 = vadd.f32 %v884, %v1002
    %v1004 = vpop.f32.mrb[0].mxu0
    %1005 = vmatprep.mubr.f32.mxu0 0.0
    %1006 = vmatmul.mubr.f32.gmra.mrb[0].mxu0 %v903
    %v1007 = vpop.f32.mrb[0].mxu0
    %v1008 = vadd.f32 %v885, %v1007
    %v1009 = vpop.f32.mrb[0].mxu0
    %1010 = vmatprep.mubr.f32.mxu0 0.0
    %1011 = vmatmul.mubr.f32.gmra.mrb[0].mxu0 %v905
    %v1012 = vpop.f32.mrb[0].mxu0
    %v1013 = vadd.f32 %v886, %v1012
    %v1014 = vpop.f32.mrb[0].mxu0
    %1015 = vmatprep.mubr.f32.mxu0 0.0
    %1016 = vmatmul.mubr.f32.gmra.mrb[0].mxu0 %v907
    %v1017 = vpop.f32.mrb[0].mxu0
    %v1018 = vadd.f32 %v887, %v1017
    %v1019 = vpop.f32.mrb[0].mxu0
    %1020 = vmatprep.mubr.f32.mxu0 0.0
    %1021 = vmatmul.mubr.f32.gmra.mrb[0].mxu0 %v909
    %v1022 = vpop.f32.mrb[0].mxu0
    %v1023 = vadd.f32 %v888, %v1022
    %v1024 = vpop.f32.mrb[0].mxu0
    %1025 = vmatprep.mubr.f32.mxu0 0.0
    %1026 = vmatmul.mubr.f32.gmra.mrb[0].mxu0 %v911
    %v1027 = vpop.f32.mrb[0].mxu0
    %v1028 = vadd.f32 %v889, %v1027
    %v1029 = vpop.f32.mrb[0].mxu0
    %1030 = vmatprep.mubr.f32.mxu0 0.0
    %1031 = vmatmul.mubr.f32.gmra.mrb[0].mxu0 %v913
    %v1032 = vpop.f32.mrb[0].mxu0
    %v1033 = vadd.f32 %v890, %v1032
    %v1034 = vpop.f32.mrb[0].mxu0
    %1035 = vmatprep.mubr.f32.mxu0 0.0
    %1036 = vmatmul.mubr.f32.gmra.mrb[0].mxu0 %v915
    %v1037 = vpop.f32.mrb[0].mxu0
    %v1038 = vadd.f32 %v891, %v1037
    %v1039 = vpop.f32.mrb[0].mxu0
    %1040 = vmatprep.mubr.f32.mxu0 0.0
    %1041 = vmatmul.mubr.f32.gmra.mrb[0].mxu0 %v917
    %v1042 = vpop.f32.mrb[0].mxu0
    %v1043 = vadd.f32 %v892, %v1042
    %v1044 = vpop.f32.mrb[0].mxu0
    %1045 = vmatprep.mubr.f32.mxu0 0.0
    %1046 = vmatmul.mubr.f32.gmra.mrb[0].mxu0 %v919
    %v1047 = vpop.f32.mrb[0].mxu0
    %v1048 = vadd.f32 %v893, %v1047
    %v1049 = vpop.f32.mrb[0].mxu0
    %1050 = vmatprep.mubr.f32.mxu0 0.0
    %1051 = vmatmul.mubr.f32.gmra.mrb[0].mxu0 %v921
    %v1052 = vpop.f32.mrb[0].mxu0
    %v1053 = vadd.f32 %v894, %v1052
    %v1054 = vpop.f32.mrb[0].mxu0
    %1055 = vmatprep.mubr.f32.mxu0 0.0
    %1056 = vmatmul.mubr.f32.gmra.mrb[0].mxu0 %v923
    %v1057 = vpop.f32.mrb[0].mxu0
    %v1058 = vadd.f32 %v895, %v1057
    %v1059 = vpop.f32.mrb[0].mxu0
    %1060 = vmatprep.mubr.f32.mxu0 0.0
    %1061 = vmatmul.mubr.f32.gmra.mrb[0].mxu0 %v925
    %v1062 = vpop.f32.mrb[0].mxu0
    %v1063 = vadd.f32 %v896, %v1062
    %v1064 = vpop.f32.mrb[0].mxu0
    %1065 = vmatprep.mubr.f32.mxu0 0.0
    %1066 = vmatmul.mubr.f32.gmra.mrb[0].mxu0 %v927
    %v1067 = vpop.f32.mrb[0].mxu0
    %v1068 = vadd.f32 %v897, %v1067
    %v1069 = vpop.f32.mrb[0].mxu0
    %1070 = vmatprep.mubr.f32.mxu0 0.0
    %1071 = vmatmul.mubr.f32.gmra.mrb[0].mxu0 %v929
    %v1072 = vpop.f32.mrb[0].mxu0
    %v1073 = vadd.f32 %v898, %v1072
    %v1074 = vpop.f32.mrb[0].mxu0
    %1075 = vdwg.mxu0
    %v1076 = vld [vmem:[%s5 + $0x4] sm:$0x1]
    %v1077 = vlaneseq
    %v1078 = vshrl.u32 %v1077, 7
    %v1079 = vsub.s32 0, %v1078
    %v1080 = vrot.slane %v1076, %v1079
    %v1081 = vadd.f32 %v998, %v1080
    %v1082 = vadd.f32 %v1003, %v1080
    %v1083 = vadd.f32 %v1008, %v1080
    %v1084 = vadd.f32 %v1013, %v1080
    %v1085 = vadd.f32 %v1018, %v1080
    %v1086 = vadd.f32 %v1023, %v1080
    %v1087 = vadd.f32 %v1028, %v1080
    %v1088 = vadd.f32 %v1033, %v1080
    %v1089 = vadd.f32 %v1038, %v1080
    %v1090 = vadd.f32 %v1043, %v1080
    %v1091 = vadd.f32 %v1048, %v1080
    %v1092 = vadd.f32 %v1053, %v1080
    %v1093 = vadd.f32 %v1058, %v1080
    %v1094 = vadd.f32 %v1063, %v1080
    %v1095 = vadd.f32 %v1068, %v1080
    %v1096 = vadd.f32 %v1073, %v1080
    %v1097 = vmax.f32 %v1081, 0.0
    %v1098 = vmax.f32 %v1082, 0.0
    %v1099 = vmax.f32 %v1083, 0.0
    %v1100 = vmax.f32 %v1084, 0.0
    %v1101 = vmax.f32 %v1085, 0.0
    %v1102 = vmax.f32 %v1086, 0.0
    %v1103 = vmax.f32 %v1087, 0.0
    %v1104 = vmax.f32 %v1088, 0.0
    %v1105 = vmax.f32 %v1089, 0.0
    %v1106 = vmax.f32 %v1090, 0.0
    %v1107 = vmax.f32 %v1091, 0.0
    %v1108 = vmax.f32 %v1092, 0.0
    %v1109 = vmax.f32 %v1093, 0.0
    %v1110 = vmax.f32 %v1094, 0.0
    %v1111 = vmax.f32 %v1095, 0.0
    %v1112 = vmax.f32 %v1096, 0.0
    %s1113 = scalar_lea.vmem [#allocation3], 320
    %v1114 = vld [vmem:[%s1113] sm:$0xff]
    %v1115 = vld [vmem:[%s1113 + $0x8] sm:$0xff]
    %v1116 = vld [vmem:[%s1113 + $0x10] sm:$0xff]
    %v1117 = vld [vmem:[%s1113 + $0x18] sm:$0xff]
    %v1118 = vld [vmem:[%s1113 + $0x20] sm:$0xff]
    %v1119 = vld [vmem:[%s1113 + $0x28] sm:$0xff]
    %v1120 = vld [vmem:[%s1113 + $0x30] sm:$0xff]
    %v1121 = vld [vmem:[%s1113 + $0x38] sm:$0xff]
    %v1122 = vld [vmem:[%s5 + $0x5] sm:$0x1]
    %v1123 = vlaneseq
    %v1124 = vshrl.u32 %v1123, 7
    %v1125 = vsub.s32 0, %v1124
    %v1126 = vrot.slane %v1122, %v1125
    %v1128 = vsel %vm56, %v1097, 0
    %v1131 = vsel %vm56, %v1098, 0
    %v1134 = vsel %vm56, %v1099, 0
    %v1137 = vsel %vm56, %v1100, 0
    %v1140 = vsel %vm56, %v1101, 0
    %v1143 = vsel %vm56, %v1102, 0
    %v1146 = vsel %vm56, %v1103, 0
    %v1149 = vsel %vm56, %v1104, 0
    %v1152 = vsel %vm56, %v1105, 0
    %v1155 = vsel %vm56, %v1106, 0
    %v1158 = vsel %vm56, %v1107, 0
    %v1161 = vsel %vm56, %v1108, 0
    %v1164 = vsel %vm56, %v1109, 0
    %v1167 = vsel %vm56, %v1110, 0
    %v1170 = vsel %vm56, %v1111, 0
    %v1173 = vsel %vm56, %v1112, 0
    %1175 = vmatprep.subr.mxu0 0.0
    %1176 = vmatpush1.msra.mxu0 %v1114
    %1177 = vmatprep.subr.mxu0 0.0
    %1178 = vmatpush1.msra.mxu0 %v1115
    %1179 = vmatprep.subr.mxu0 0.0
    %1180 = vmatpush1.msra.mxu0 %v1116
    %1181 = vmatprep.subr.mxu0 0.0
    %1182 = vmatpush1.msra.mxu0 %v1117
    %1183 = vmatprep.subr.mxu0 0.0
    %1184 = vmatpush1.msra.mxu0 %v1118
    %1185 = vmatprep.subr.mxu0 0.0
    %1186 = vmatpush1.msra.mxu0 %v1119
    %1187 = vmatprep.subr.mxu0 0.0
    %1188 = vmatpush1.msra.mxu0 %v1120
    %1189 = vmatprep.subr.mxu0 0.0
    %1190 = vmatpush1.msra.mxu0 %v1121
    %1191 = vmatprep.subr.mxu0 0.0
    %1192 = vmatpush1.msra.mxu0 0.0
    %1193 = vmatprep.subr.mxu0 0.0
    %1194 = vmatpush1.msra.mxu0 0.0
    %1195 = vmatprep.subr.mxu0 0.0
    %1196 = vmatpush1.msra.mxu0 0.0
    %1197 = vmatprep.subr.mxu0 0.0
    %1198 = vmatpush1.msra.mxu0 0.0
    %1199 = vmatprep.subr.mxu0 0.0
    %1200 = vmatpush1.msra.mxu0 0.0
    %1201 = vmatprep.subr.mxu0 0.0
    %1202 = vmatpush1.msra.mxu0 0.0
    %1203 = vmatprep.subr.mxu0 0.0
    %1204 = vmatpush1.msra.mxu0 0.0
    %1205 = vmatprep.subr.mxu0 0.0
    %1206 = vmatpush1.msra.mxu0 0.0
    %1207 = vmatprep.subr.mxu0 0.0
    %1208 = vmatpush1.msra.mxu0 0.0
    %1209 = vmatprep.subr.mxu0 0.0
    %1210 = vmatpush1.msra.mxu0 0.0
    %1211 = vmatprep.subr.mxu0 0.0
    %1212 = vmatpush1.msra.mxu0 0.0
    %1213 = vmatprep.subr.mxu0 0.0
    %1214 = vmatpush1.msra.mxu0 0.0
    %1215 = vmatprep.subr.mxu0 0.0
    %1216 = vmatpush1.msra.mxu0 0.0
    %1217 = vmatprep.subr.mxu0 0.0
    %1218 = vmatpush1.msra.mxu0 0.0
    %1219 = vmatprep.subr.mxu0 0.0
    %1220 = vmatpush1.msra.mxu0 0.0
    %1221 = vmatprep.subr.mxu0 0.0
    %1222 = vmatpush1.msra.mxu0 0.0
    %1223 = vmatprep.subr.mxu0 0.0
    %1224 = vmatpush1.msra.mxu0 0.0
    %1225 = vmatprep.subr.mxu0 0.0
    %1226 = vmatpush1.msra.mxu0 0.0
    %1227 = vmatprep.subr.mxu0 0.0
    %1228 = vmatpush1.msra.mxu0 0.0
    %1229 = vmatprep.subr.mxu0 0.0
    %1230 = vmatpush1.msra.mxu0 0.0
    %1231 = vmatprep.subr.mxu0 0.0
    %1232 = vmatpush1.msra.mxu0 0.0
    %1233 = vmatprep.subr.mxu0 0.0
    %1234 = vmatpush1.msra.mxu0 0.0
    %1235 = vmatprep.subr.mxu0 0.0
    %1236 = vmatpush1.msra.mxu0 0.0
    %1237 = vmatprep.subr.mxu0 0.0
    %1238 = vmatpush1.msra.mxu0 0.0
    %1239 = vmatprep.mubr.f32.mxu0 0.0
    %1240 = vmatmul.mubr.f32.gmra.mrb[0].mxu0 %v1128
    %v1241 = vpop.f32.mrb[0].mxu0
    %v1242 = vadd.f32 %v1126, %v1241
    %v1243 = vpop.f32.mrb[0].mxu0
    %1244 = vmatprep.mubr.f32.mxu0 0.0
    %1245 = vmatmul.mubr.f32.gmra.mrb[0].mxu0 %v1131
    %v1246 = vpop.f32.mrb[0].mxu0
    %v1247 = vadd.f32 %v1126, %v1246
    %v1248 = vpop.f32.mrb[0].mxu0
    %1249 = vmatprep.mubr.f32.mxu0 0.0
    %1250 = vmatmul.mubr.f32.gmra.mrb[0].mxu0 %v1134
    %v1251 = vpop.f32.mrb[0].mxu0
    %v1252 = vadd.f32 %v1126, %v1251
    %v1253 = vpop.f32.mrb[0].mxu0
    %1254 = vmatprep.mubr.f32.mxu0 0.0
    %1255 = vmatmul.mubr.f32.gmra.mrb[0].mxu0 %v1137
    %v1256 = vpop.f32.mrb[0].mxu0
    %v1257 = vadd.f32 %v1126, %v1256
    %v1258 = vpop.f32.mrb[0].mxu0
    %1259 = vmatprep.mubr.f32.mxu0 0.0
    %1260 = vmatmul.mubr.f32.gmra.mrb[0].mxu0 %v1140
    %v1261 = vpop.f32.mrb[0].mxu0
    %v1262 = vadd.f32 %v1126, %v1261
    %v1263 = vpop.f32.mrb[0].mxu0
    %1264 = vmatprep.mubr.f32.mxu0 0.0
    %1265 = vmatmul.mubr.f32.gmra.mrb[0].mxu0 %v1143
    %v1266 = vpop.f32.mrb[0].mxu0
    %v1267 = vadd.f32 %v1126, %v1266
    %v1268 = vpop.f32.mrb[0].mxu0
    %1269 = vmatprep.mubr.f32.mxu0 0.0
    %1270 = vmatmul.mubr.f32.gmra.mrb[0].mxu0 %v1146
    %v1271 = vpop.f32.mrb[0].mxu0
    %v1272 = vadd.f32 %v1126, %v1271
    %v1273 = vpop.f32.mrb[0].mxu0
    %1274 = vmatprep.mubr.f32.mxu0 0.0
    %1275 = vmatmul.mubr.f32.gmra.mrb[0].mxu0 %v1149
    %v1276 = vpop.f32.mrb[0].mxu0
    %v1277 = vadd.f32 %v1126, %v1276
    %v1278 = vpop.f32.mrb[0].mxu0
    %1279 = vmatprep.mubr.f32.mxu0 0.0
    %1280 = vmatmul.mubr.f32.gmra.mrb[0].mxu0 %v1152
    %v1281 = vpop.f32.mrb[0].mxu0
    %v1282 = vadd.f32 %v1126, %v1281
    %v1283 = vpop.f32.mrb[0].mxu0
    %1284 = vmatprep.mubr.f32.mxu0 0.0
    %1285 = vmatmul.mubr.f32.gmra.mrb[0].mxu0 %v1155
    %v1286 = vpop.f32.mrb[0].mxu0
    %v1287 = vadd.f32 %v1126, %v1286
    %v1288 = vpop.f32.mrb[0].mxu0
    %1289 = vmatprep.mubr.f32.mxu0 0.0
    %1290 = vmatmul.mubr.f32.gmra.mrb[0].mxu0 %v1158
    %v1291 = vpop.f32.mrb[0].mxu0
    %v1292 = vadd.f32 %v1126, %v1291
    %v1293 = vpop.f32.mrb[0].mxu0
    %1294 = vmatprep.mubr.f32.mxu0 0.0
    %1295 = vmatmul.mubr.f32.gmra.mrb[0].mxu0 %v1161
    %v1296 = vpop.f32.mrb[0].mxu0
    %v1297 = vadd.f32 %v1126, %v1296
    %v1298 = vpop.f32.mrb[0].mxu0
    %1299 = vmatprep.mubr.f32.mxu0 0.0
    %1300 = vmatmul.mubr.f32.gmra.mrb[0].mxu0 %v1164
    %v1301 = vpop.f32.mrb[0].mxu0
    %v1302 = vadd.f32 %v1126, %v1301
    %v1303 = vpop.f32.mrb[0].mxu0
    %1304 = vmatprep.mubr.f32.mxu0 0.0
    %1305 = vmatmul.mubr.f32.gmra.mrb[0].mxu0 %v1167
    %v1306 = vpop.f32.mrb[0].mxu0
    %v1307 = vadd.f32 %v1126, %v1306
    %v1308 = vpop.f32.mrb[0].mxu0
    %1309 = vmatprep.mubr.f32.mxu0 0.0
    %1310 = vmatmul.mubr.f32.gmra.mrb[0].mxu0 %v1170
    %v1311 = vpop.f32.mrb[0].mxu0
    %v1312 = vadd.f32 %v1126, %v1311
    %v1313 = vpop.f32.mrb[0].mxu0
    %1314 = vmatprep.mubr.f32.mxu0 0.0
    %1315 = vmatmul.mubr.f32.gmra.mrb[0].mxu0 %v1173
    %v1316 = vpop.f32.mrb[0].mxu0
    %v1317 = vadd.f32 %v1126, %v1316
    %v1318 = vpop.f32.mrb[0].mxu0
    %1319 = vdwg.mxu0
    %v1320 = vmax.f32 %v1242, 0.0
    %v1321 = vmax.f32 %v1247, 0.0
    %v1322 = vmax.f32 %v1252, 0.0
    %v1323 = vmax.f32 %v1257, 0.0
    %v1324 = vmax.f32 %v1262, 0.0
    %v1325 = vmax.f32 %v1267, 0.0
    %v1326 = vmax.f32 %v1272, 0.0
    %v1327 = vmax.f32 %v1277, 0.0
    %v1328 = vmax.f32 %v1282, 0.0
    %v1329 = vmax.f32 %v1287, 0.0
    %v1330 = vmax.f32 %v1292, 0.0
    %v1331 = vmax.f32 %v1297, 0.0
    %v1332 = vmax.f32 %v1302, 0.0
    %v1333 = vmax.f32 %v1307, 0.0
    %v1334 = vmax.f32 %v1312, 0.0
    %v1335 = vmax.f32 %v1317, 0.0
    %v1336 = vld [vmem:[%s3] sm:$0xff]
    %v1337 = vld [vmem:[%s3 + $0x8] sm:$0xff]
    %1339 = vset.pattern.permute.xlu0 60
    %1340 = vperm.xlu0 %1339, %v773
    %v1341 = vpop.permute.xlu0 %1340
    %1344 = vset.pattern.permute.xlu0 60
    %1345 = vperm.xlu0 %1344, %v774
    %v1346 = vpop.permute.xlu0 %1345
    %1349 = vset.pattern.permute.xlu0 60
    %1350 = vperm.xlu0 %1349, %v775
    %v1351 = vpop.permute.xlu0 %1350
    %1354 = vset.pattern.permute.xlu0 60
    %1355 = vperm.xlu0 %1354, %v776
    %v1356 = vpop.permute.xlu0 %1355
    %1359 = vset.pattern.permute.xlu0 60
    %1360 = vperm.xlu0 %1359, %v777
    %v1361 = vpop.permute.xlu0 %1360
    %1364 = vset.pattern.permute.xlu0 60
    %1365 = vperm.xlu0 %1364, %v778
    %v1366 = vpop.permute.xlu0 %1365
    %1369 = vset.pattern.permute.xlu0 60
    %1370 = vperm.xlu0 %1369, %v779
    %v1371 = vpop.permute.xlu0 %1370
    %1374 = vset.pattern.permute.xlu0 60
    %1375 = vperm.xlu0 %1374, %v780
    %v1376 = vpop.permute.xlu0 %1375
    %1379 = vset.pattern.permute.xlu0 60
    %1380 = vperm.xlu0 %1379, %v781
    %v1381 = vpop.permute.xlu0 %1380
    %1384 = vset.pattern.permute.xlu0 60
    %1385 = vperm.xlu0 %1384, %v782
    %v1386 = vpop.permute.xlu0 %1385
    %1389 = vset.pattern.permute.xlu0 60
    %1390 = vperm.xlu0 %1389, %v783
    %v1391 = vpop.permute.xlu0 %1390
    %1394 = vset.pattern.permute.xlu0 60
    %1395 = vperm.xlu0 %1394, %v784
    %v1396 = vpop.permute.xlu0 %1395
    %1399 = vset.pattern.permute.xlu0 60
    %1400 = vperm.xlu0 %1399, %v785
    %v1401 = vpop.permute.xlu0 %1400
    %1404 = vset.pattern.permute.xlu0 60
    %1405 = vperm.xlu0 %1404, %v786
    %v1406 = vpop.permute.xlu0 %1405
    %1409 = vset.pattern.permute.xlu0 60
    %1410 = vperm.xlu0 %1409, %v787
    %v1411 = vpop.permute.xlu0 %1410
    %1414 = vset.pattern.permute.xlu0 60
    %1415 = vperm.xlu0 %1414, %v788
    %v1416 = vpop.permute.xlu0 %1415
    %v1418 = vmul.f32 %v1320, %v1341
    %v1419 = vmul.f32 %v1321, %v1346
    %v1420 = vmul.f32 %v1322, %v1351
    %v1421 = vmul.f32 %v1323, %v1356
    %v1422 = vmul.f32 %v1324, %v1361
    %v1423 = vmul.f32 %v1325, %v1366
    %v1424 = vmul.f32 %v1326, %v1371
    %v1425 = vmul.f32 %v1327, %v1376
    %v1426 = vmul.f32 %v1328, %v1381
    %v1427 = vmul.f32 %v1329, %v1386
    %v1428 = vmul.f32 %v1330, %v1391
    %v1429 = vmul.f32 %v1331, %v1396
    %v1430 = vmul.f32 %v1332, %v1401
    %v1431 = vmul.f32 %v1333, %v1406
    %v1432 = vmul.f32 %v1334, %v1411
    %v1433 = vmul.f32 %v1335, %v1416
    %1434 = vmatprep.subr.mxu0 0.0
    %1435 = vmatpush1.msra.mxu0 %v1418
    %1436 = vmatprep.subr.mxu0 0.0
    %1437 = vmatpush1.msra.mxu0 %v1419
    %1438 = vmatprep.subr.mxu0 0.0
    %1439 = vmatpush1.msra.mxu0 %v1420
    %1440 = vmatprep.subr.mxu0 0.0
    %1441 = vmatpush1.msra.mxu0 %v1421
    %1442 = vmatprep.subr.mxu0 0.0
    %1443 = vmatpush1.msra.mxu0 %v1422
    %1444 = vmatprep.subr.mxu0 0.0
    %1445 = vmatpush1.msra.mxu0 %v1423
    %1446 = vmatprep.subr.mxu0 0.0
    %1447 = vmatpush1.msra.mxu0 %v1424
    %1448 = vmatprep.subr.mxu0 0.0
    %1449 = vmatpush1.msra.mxu0 %v1425
    %1450 = vmatprep.subr.mxu0 0.0
    %1451 = vmatpush1.msra.mxu0 %v1426
    %1452 = vmatprep.subr.mxu0 0.0
    %1453 = vmatpush1.msra.mxu0 %v1427
    %1454 = vmatprep.subr.mxu0 0.0
    %1455 = vmatpush1.msra.mxu0 %v1428
    %1456 = vmatprep.subr.mxu0 0.0
    %1457 = vmatpush1.msra.mxu0 %v1429
    %1458 = vmatprep.subr.mxu0 0.0
    %1459 = vmatpush1.msra.mxu0 %v1430
    %1460 = vmatprep.subr.mxu0 0.0
    %1461 = vmatpush1.msra.mxu0 %v1431
    %1462 = vmatprep.subr.mxu0 0.0
    %1463 = vmatpush1.msra.mxu0 %v1432
    %1464 = vmatprep.subr.mxu0 0.0
    %1465 = vmatpush1.msra.mxu0 %v1433
    %1466 = vmatprep.subr.mxu0 0.0
    %1467 = vmatpush1.msra.mxu0 0.0
    %1468 = vmatprep.subr.mxu0 0.0
    %1469 = vmatpush1.msra.mxu0 0.0
    %1470 = vmatprep.subr.mxu0 0.0
    %1471 = vmatpush1.msra.mxu0 0.0
    %1472 = vmatprep.subr.mxu0 0.0
    %1473 = vmatpush1.msra.mxu0 0.0
    %1474 = vmatprep.subr.mxu0 0.0
    %1475 = vmatpush1.msra.mxu0 0.0
    %1476 = vmatprep.subr.mxu0 0.0
    %1477 = vmatpush1.msra.mxu0 0.0
    %1478 = vmatprep.subr.mxu0 0.0
    %1479 = vmatpush1.msra.mxu0 0.0
    %1480 = vmatprep.subr.mxu0 0.0
    %1481 = vmatpush1.msra.mxu0 0.0
    %1482 = vmatprep.subr.mxu0 0.0
    %1483 = vmatpush1.msra.mxu0 0.0
    %1484 = vmatprep.subr.mxu0 0.0
    %1485 = vmatpush1.msra.mxu0 0.0
    %1486 = vmatprep.subr.mxu0 0.0
    %1487 = vmatpush1.msra.mxu0 0.0
    %1488 = vmatprep.subr.mxu0 0.0
    %1489 = vmatpush1.msra.mxu0 0.0
    %1490 = vmatprep.subr.mxu0 0.0
    %1491 = vmatpush1.msra.mxu0 0.0
    %1492 = vmatprep.subr.mxu0 0.0
    %1493 = vmatpush1.msra.mxu0 0.0
    %1494 = vmatprep.subr.mxu0 0.0
    %1495 = vmatpush1.msra.mxu0 0.0
    %1496 = vmatprep.subr.mxu0 0.0
    %1497 = vmatpush1.msra.mxu0 0.0
    %1498 = vmatprep.mubr.f32.mxu0 0.0
    %1499 = vmatmul.mubr.f32.gmra.mrb[0].mxu0 %v1336
    %v1500 = vpop.f32.mrb[0].mxu0
    %v1501 = vadd.f32 0.0, %v1500
    %v1502 = vpop.f32.mrb[0].mxu0
    %1503 = vmatprep.mubr.f32.mxu0 0.0
    %1504 = vmatmul.mubr.f32.gmra.mrb[0].mxu0 %v1337
    %v1505 = vpop.f32.mrb[0].mxu0
    %v1506 = vadd.f32 0.0, %v1505
    %v1507 = vpop.f32.mrb[0].mxu0
    %1508 = vdwg.mxu0
    %1509 = vrot.lane.b32.xlu0 %v773, 68
    %v1510 = vpop.permute.xlu0 %1509
    %1511 = vrot.lane.b32.xlu0 %v774, 68
    %v1512 = vpop.permute.xlu0 %1511
    %1513 = vrot.lane.b32.xlu0 %v775, 68
    %v1514 = vpop.permute.xlu0 %1513
    %1515 = vrot.lane.b32.xlu0 %v776, 68
    %v1516 = vpop.permute.xlu0 %1515
    %1517 = vrot.lane.b32.xlu0 %v777, 68
    %v1518 = vpop.permute.xlu0 %1517
    %1519 = vrot.lane.b32.xlu0 %v778, 68
    %v1520 = vpop.permute.xlu0 %1519
    %1521 = vrot.lane.b32.xlu0 %v779, 68
    %v1522 = vpop.permute.xlu0 %1521
    %1523 = vrot.lane.b32.xlu0 %v780, 68
    %v1524 = vpop.permute.xlu0 %1523
    %1525 = vrot.lane.b32.xlu0 %v781, 68
    %v1526 = vpop.permute.xlu0 %1525
    %1527 = vrot.lane.b32.xlu0 %v782, 68
    %v1528 = vpop.permute.xlu0 %1527
    %1529 = vrot.lane.b32.xlu0 %v783, 68
    %v1530 = vpop.permute.xlu0 %1529
    %1531 = vrot.lane.b32.xlu0 %v784, 68
    %v1532 = vpop.permute.xlu0 %1531
    %1533 = vrot.lane.b32.xlu0 %v785, 68
    %v1534 = vpop.permute.xlu0 %1533
    %1535 = vrot.lane.b32.xlu0 %v786, 68
    %v1536 = vpop.permute.xlu0 %1535
    %1537 = vrot.lane.b32.xlu0 %v787, 68
    %v1538 = vpop.permute.xlu0 %1537
    %1539 = vrot.lane.b32.xlu0 %v788, 68
    %v1540 = vpop.permute.xlu0 %1539
    %1557 = vmatprep.subr.mxu0 0.0
    %1558 = vmatpush1.msra.mxu0 %v1510
    %1559 = vmatprep.subr.mxu0 0.0
    %1560 = vmatpush1.msra.mxu0 %v1512
    %1561 = vmatprep.subr.mxu0 0.0
    %1562 = vmatpush1.msra.mxu0 %v1514
    %1563 = vmatprep.subr.mxu0 0.0
    %1564 = vmatpush1.msra.mxu0 %v1516
    %1565 = vmatprep.subr.mxu0 0.0
    %1566 = vmatpush1.msra.mxu0 %v1518
    %1567 = vmatprep.subr.mxu0 0.0
    %1568 = vmatpush1.msra.mxu0 %v1520
    %1569 = vmatprep.subr.mxu0 0.0
    %1570 = vmatpush1.msra.mxu0 %v1522
    %1571 = vmatprep.subr.mxu0 0.0
    %1572 = vmatpush1.msra.mxu0 %v1524
    %1573 = vmatprep.subr.mxu0 0.0
    %1574 = vmatpush1.msra.mxu0 %v1526
    %1575 = vmatprep.subr.mxu0 0.0
    %1576 = vmatpush1.msra.mxu0 %v1528
    %1577 = vmatprep.subr.mxu0 0.0
    %1578 = vmatpush1.msra.mxu0 %v1530
    %1579 = vmatprep.subr.mxu0 0.0
    %1580 = vmatpush1.msra.mxu0 %v1532
    %1581 = vmatprep.subr.mxu0 0.0
    %1582 = vmatpush1.msra.mxu0 %v1534
    %1583 = vmatprep.subr.mxu0 0.0
    %1584 = vmatpush1.msra.mxu0 %v1536
    %1585 = vmatprep.subr.mxu0 0.0
    %1586 = vmatpush1.msra.mxu0 %v1538
    %1587 = vmatprep.subr.mxu0 0.0
    %1588 = vmatpush1.msra.mxu0 %v1540
    %1589 = vmatprep.subr.mxu0 0.0
    %1590 = vmatpush1.msra.mxu0 0.0
    %1591 = vmatprep.subr.mxu0 0.0
    %1592 = vmatpush1.msra.mxu0 0.0
    %1593 = vmatprep.subr.mxu0 0.0
    %1594 = vmatpush1.msra.mxu0 0.0
    %1595 = vmatprep.subr.mxu0 0.0
    %1596 = vmatpush1.msra.mxu0 0.0
    %1597 = vmatprep.subr.mxu0 0.0
    %1598 = vmatpush1.msra.mxu0 0.0
    %1599 = vmatprep.subr.mxu0 0.0
    %1600 = vmatpush1.msra.mxu0 0.0
    %1601 = vmatprep.subr.mxu0 0.0
    %1602 = vmatpush1.msra.mxu0 0.0
    %1603 = vmatprep.subr.mxu0 0.0
    %1604 = vmatpush1.msra.mxu0 0.0
    %1605 = vmatprep.subr.mxu0 0.0
    %1606 = vmatpush1.msra.mxu0 0.0
    %1607 = vmatprep.subr.mxu0 0.0
    %1608 = vmatpush1.msra.mxu0 0.0
    %1609 = vmatprep.subr.mxu0 0.0
    %1610 = vmatpush1.msra.mxu0 0.0
    %1611 = vmatprep.subr.mxu0 0.0
    %1612 = vmatpush1.msra.mxu0 0.0
    %1613 = vmatprep.subr.mxu0 0.0
    %1614 = vmatpush1.msra.mxu0 0.0
    %1615 = vmatprep.subr.mxu0 0.0
    %1616 = vmatpush1.msra.mxu0 0.0
    %1617 = vmatprep.subr.mxu0 0.0
    %1618 = vmatpush1.msra.mxu0 0.0
    %1619 = vmatprep.subr.mxu0 0.0
    %1620 = vmatpush1.msra.mxu0 0.0
    %1621 = vmatprep.mubr.f32.mxu0 0.0
    %1622 = vmatmul.mubr.f32.gmra.mrb[0].mxu0 %v1336
    %v1623 = vpop.f32.mrb[0].mxu0
    %v1624 = vadd.f32 0.0, %v1623
    %v1625 = vpop.f32.mrb[0].mxu0
    %1626 = vmatprep.mubr.f32.mxu0 0.0
    %1627 = vmatmul.mubr.f32.gmra.mrb[0].mxu0 %v1337
    %v1628 = vpop.f32.mrb[0].mxu0
    %v1629 = vadd.f32 0.0, %v1628
    %v1630 = vpop.f32.mrb[0].mxu0
    %1631 = vdwg.mxu0
    %s1632 = scalar_lea.vmem [#allocation3], 384
    %v1633 = vld [vmem:[%s1632] sm:$0xff]
    %v1634 = vld [vmem:[%s1632 + $0x8] sm:$0xff]
    %v1635 = vld [vmem:[%s1632 + $0x10] sm:$0xff]
    %v1636 = vld [vmem:[%s1632 + $0x18] sm:$0xff]
    %v1637 = vld [vmem:[%s1632 + $0x20] sm:$0xff]
    %v1638 = vld [vmem:[%s1632 + $0x28] sm:$0xff]
    %v1639 = vld [vmem:[%s1632 + $0x30] sm:$0xff]
    %v1640 = vld [vmem:[%s1632 + $0x38] sm:$0xff]
    %v1641 = vld [vmem:[%s5 + $0x6] sm:$0x1]
    %1643 = vset.pattern.permute.xlu0 0
    %1644 = vperm.xlu0 %1643, %v1624
    %v1645 = vpop.permute.xlu0 %1644
    %1648 = vset.pattern.permute.xlu0 0
    %1649 = vperm.xlu0 %1648, %v1629
    %v1650 = vpop.permute.xlu0 %1649
    %v1652 = vlaneseq
    %v1653 = vshrl.u32 %v1652, 7
    %v1654 = vsub.s32 0, %v1653
    %v1655 = vrot.slane %v1641, %v1654
    %v1656 = vmul.f32 %v1645, %v1655
    %v1657 = vmul.f32 %v1650, %v1655
    %v1659 = vsel %vm56, %v1501, 0
    %v1662 = vsel %vm56, %v1506, 0
    %1664 = vmatprep.subr.mxu0 0.0
    %1665 = vmatpush1.msra.mxu0 %v1633
    %1666 = vmatprep.subr.mxu0 0.0
    %1667 = vmatpush1.msra.mxu0 %v1634
    %1668 = vmatprep.subr.mxu0 0.0
    %1669 = vmatpush1.msra.mxu0 %v1635
    %1670 = vmatprep.subr.mxu0 0.0
    %1671 = vmatpush1.msra.mxu0 %v1636
    %1672 = vmatprep.subr.mxu0 0.0
    %1673 = vmatpush1.msra.mxu0 %v1637
    %1674 = vmatprep.subr.mxu0 0.0
    %1675 = vmatpush1.msra.mxu0 %v1638
    %1676 = vmatprep.subr.mxu0 0.0
    %1677 = vmatpush1.msra.mxu0 %v1639
    %1678 = vmatprep.subr.mxu0 0.0
    %1679 = vmatpush1.msra.mxu0 %v1640
    %1680 = vmatprep.subr.mxu0 0.0
    %1681 = vmatpush1.msra.mxu0 0.0
    %1682 = vmatprep.subr.mxu0 0.0
    %1683 = vmatpush1.msra.mxu0 0.0
    %1684 = vmatprep.subr.mxu0 0.0
    %1685 = vmatpush1.msra.mxu0 0.0
    %1686 = vmatprep.subr.mxu0 0.0
    %1687 = vmatpush1.msra.mxu0 0.0
    %1688 = vmatprep.subr.mxu0 0.0
    %1689 = vmatpush1.msra.mxu0 0.0
    %1690 = vmatprep.subr.mxu0 0.0
    %1691 = vmatpush1.msra.mxu0 0.0
    %1692 = vmatprep.subr.mxu0 0.0
    %1693 = vmatpush1.msra.mxu0 0.0
    %1694 = vmatprep.subr.mxu0 0.0
    %1695 = vmatpush1.msra.mxu0 0.0
    %1696 = vmatprep.subr.mxu0 0.0
    %1697 = vmatpush1.msra.mxu0 0.0
    %1698 = vmatprep.subr.mxu0 0.0
    %1699 = vmatpush1.msra.mxu0 0.0
    %1700 = vmatprep.subr.mxu0 0.0
    %1701 = vmatpush1.msra.mxu0 0.0
    %1702 = vmatprep.subr.mxu0 0.0
    %1703 = vmatpush1.msra.mxu0 0.0
    %1704 = vmatprep.subr.mxu0 0.0
    %1705 = vmatpush1.msra.mxu0 0.0
    %1706 = vmatprep.subr.mxu0 0.0
    %1707 = vmatpush1.msra.mxu0 0.0
    %1708 = vmatprep.subr.mxu0 0.0
    %1709 = vmatpush1.msra.mxu0 0.0
    %1710 = vmatprep.subr.mxu0 0.0
    %1711 = vmatpush1.msra.mxu0 0.0
    %1712 = vmatprep.subr.mxu0 0.0
    %1713 = vmatpush1.msra.mxu0 0.0
    %1714 = vmatprep.subr.mxu0 0.0
    %1715 = vmatpush1.msra.mxu0 0.0
    %1716 = vmatprep.subr.mxu0 0.0
    %1717 = vmatpush1.msra.mxu0 0.0
    %1718 = vmatprep.subr.mxu0 0.0
    %1719 = vmatpush1.msra.mxu0 0.0
    %1720 = vmatprep.subr.mxu0 0.0
    %1721 = vmatpush1.msra.mxu0 0.0
    %1722 = vmatprep.subr.mxu0 0.0
    %1723 = vmatpush1.msra.mxu0 0.0
    %1724 = vmatprep.subr.mxu0 0.0
    %1725 = vmatpush1.msra.mxu0 0.0
    %1726 = vmatprep.subr.mxu0 0.0
    %1727 = vmatpush1.msra.mxu0 0.0
    %1728 = vmatprep.mubr.f32.mxu0 0.0
    %1729 = vmatmul.mubr.f32.gmra.mrb[0].mxu0 %v1659
    %v1730 = vpop.f32.mrb[0].mxu0
    %v1731 = vadd.f32 %v1656, %v1730
    %v1732 = vpop.f32.mrb[0].mxu0
    %1733 = vmatprep.mubr.f32.mxu0 0.0
    %1734 = vmatmul.mubr.f32.gmra.mrb[0].mxu0 %v1662
    %v1735 = vpop.f32.mrb[0].mxu0
    %v1736 = vadd.f32 %v1657, %v1735
    %v1737 = vpop.f32.mrb[0].mxu0
    %1738 = vdwg.mxu0
    %s1739 = scalar_lea.vmem [#allocation3], 448
    %v1740 = vld [vmem:[%s1739] sm:$0xff]
    %v1741 = vld [vmem:[%s1739 + $0x8] sm:$0xff]
    %v1742 = vld [vmem:[%s1739 + $0x10] sm:$0xff]
    %v1743 = vld [vmem:[%s1739 + $0x18] sm:$0xff]
    %v1744 = vld [vmem:[%s1739 + $0x20] sm:$0xff]
    %v1745 = vld [vmem:[%s1739 + $0x28] sm:$0xff]
    %v1746 = vld [vmem:[%s1739 + $0x30] sm:$0xff]
    %v1747 = vld [vmem:[%s1739 + $0x38] sm:$0xff]
    %v1748 = vld [vmem:[%s5 + $0x7] sm:$0x1]
    %v1749 = vlaneseq
    %v1750 = vshrl.u32 %v1749, 7
    %v1751 = vsub.s32 0, %v1750
    %v1752 = vrot.slane %v1748, %v1751
    %v1754 = vsel %vm56, %v1731, 0
    %v1757 = vsel %vm56, %v1736, 0
    %1759 = vmatprep.subr.mxu0 0.0
    %1760 = vmatpush1.msra.mxu0 %v1740
    %1761 = vmatprep.subr.mxu0 0.0
    %1762 = vmatpush1.msra.mxu0 %v1741
    %1763 = vmatprep.subr.mxu0 0.0
    %1764 = vmatpush1.msra.mxu0 %v1742
    %1765 = vmatprep.subr.mxu0 0.0
    %1766 = vmatpush1.msra.mxu0 %v1743
    %1767 = vmatprep.subr.mxu0 0.0
    %1768 = vmatpush1.msra.mxu0 %v1744
    %1769 = vmatprep.subr.mxu0 0.0
    %1770 = vmatpush1.msra.mxu0 %v1745
    %1771 = vmatprep.subr.mxu0 0.0
    %1772 = vmatpush1.msra.mxu0 %v1746
    %1773 = vmatprep.subr.mxu0 0.0
    %1774 = vmatpush1.msra.mxu0 %v1747
    %1775 = vmatprep.subr.mxu0 0.0
    %1776 = vmatpush1.msra.mxu0 0.0
    %1777 = vmatprep.subr.mxu0 0.0
    %1778 = vmatpush1.msra.mxu0 0.0
    %1779 = vmatprep.subr.mxu0 0.0
    %1780 = vmatpush1.msra.mxu0 0.0
    %1781 = vmatprep.subr.mxu0 0.0
    %1782 = vmatpush1.msra.mxu0 0.0
    %1783 = vmatprep.subr.mxu0 0.0
    %1784 = vmatpush1.msra.mxu0 0.0
    %1785 = vmatprep.subr.mxu0 0.0
    %1786 = vmatpush1.msra.mxu0 0.0
    %1787 = vmatprep.subr.mxu0 0.0
    %1788 = vmatpush1.msra.mxu0 0.0
    %1789 = vmatprep.subr.mxu0 0.0
    %1790 = vmatpush1.msra.mxu0 0.0
    %1791 = vmatprep.subr.mxu0 0.0
    %1792 = vmatpush1.msra.mxu0 0.0
    %1793 = vmatprep.subr.mxu0 0.0
    %1794 = vmatpush1.msra.mxu0 0.0
    %1795 = vmatprep.subr.mxu0 0.0
    %1796 = vmatpush1.msra.mxu0 0.0
    %1797 = vmatprep.subr.mxu0 0.0
    %1798 = vmatpush1.msra.mxu0 0.0
    %1799 = vmatprep.subr.mxu0 0.0
    %1800 = vmatpush1.msra.mxu0 0.0
    %1801 = vmatprep.subr.mxu0 0.0
    %1802 = vmatpush1.msra.mxu0 0.0
    %1803 = vmatprep.subr.mxu0 0.0
    %1804 = vmatpush1.msra.mxu0 0.0
    %1805 = vmatprep.subr.mxu0 0.0
    %1806 = vmatpush1.msra.mxu0 0.0
    %1807 = vmatprep.subr.mxu0 0.0
    %1808 = vmatpush1.msra.mxu0 0.0
    %1809 = vmatprep.subr.mxu0 0.0
    %1810 = vmatpush1.msra.mxu0 0.0
    %1811 = vmatprep.subr.mxu0 0.0
    %1812 = vmatpush1.msra.mxu0 0.0
    %1813 = vmatprep.subr.mxu0 0.0
    %1814 = vmatpush1.msra.mxu0 0.0
    %1815 = vmatprep.subr.mxu0 0.0
    %1816 = vmatpush1.msra.mxu0 0.0
    %1817 = vmatprep.subr.mxu0 0.0
    %1818 = vmatpush1.msra.mxu0 0.0
    %1819 = vmatprep.subr.mxu0 0.0
    %1820 = vmatpush1.msra.mxu0 0.0
    %1821 = vmatprep.subr.mxu0 0.0
    %1822 = vmatpush1.msra.mxu0 0.0
    %1823 = vmatprep.mubr.f32.mxu0 0.0
    %1824 = vmatmul.mubr.f32.gmra.mrb[0].mxu0 %v1754
    %v1825 = vpop.f32.mrb[0].mxu0
    %v1826 = vadd.f32 %v1752, %v1825
    %v1827 = vpop.f32.mrb[0].mxu0
    %1828 = vmatprep.mubr.f32.mxu0 0.0
    %1829 = vmatmul.mubr.f32.gmra.mrb[0].mxu0 %v1757
    %v1830 = vpop.f32.mrb[0].mxu0
    %v1831 = vadd.f32 %v1752, %v1830
    %v1832 = vpop.f32.mrb[0].mxu0
    %1833 = vdwg.mxu0
    %v1834 = vmax.f32 %v1826, 0.0
    %v1835 = vmax.f32 %v1831, 0.0
    %s1836 = scalar_lea.vmem [#allocation3], 512
    %v1837 = vld [vmem:[%s1836] sm:$0xff]
    %v1838 = vld [vmem:[%s1836 + $0x8] sm:$0xff]
    %v1839 = vld [vmem:[%s1836 + $0x10] sm:$0xff]
    %v1840 = vld [vmem:[%s1836 + $0x18] sm:$0xff]
    %v1841 = vld [vmem:[%s1836 + $0x20] sm:$0xff]
    %v1842 = vld [vmem:[%s1836 + $0x28] sm:$0xff]
    %v1843 = vld [vmem:[%s1836 + $0x30] sm:$0xff]
    %v1844 = vld [vmem:[%s1836 + $0x38] sm:$0xff]
    %v1845 = vld [vmem:[%s5 + $0x8] sm:$0x1]
    %v1846 = vlaneseq
    %v1847 = vshrl.u32 %v1846, 7
    %v1848 = vsub.s32 0, %v1847
    %v1849 = vrot.slane %v1845, %v1848
    %v1851 = vsel %vm56, %v1834, 0
    %v1854 = vsel %vm56, %v1835, 0
    %1856 = vmatprep.subr.mxu0 0.0
    %1857 = vmatpush1.msra.mxu0 %v1837
    %1858 = vmatprep.subr.mxu0 0.0
    %1859 = vmatpush1.msra.mxu0 %v1838
    %1860 = vmatprep.subr.mxu0 0.0
    %1861 = vmatpush1.msra.mxu0 %v1839
    %1862 = vmatprep.subr.mxu0 0.0
    %1863 = vmatpush1.msra.mxu0 %v1840
    %1864 = vmatprep.subr.mxu0 0.0
    %1865 = vmatpush1.msra.mxu0 %v1841
    %1866 = vmatprep.subr.mxu0 0.0
    %1867 = vmatpush1.msra.mxu0 %v1842
    %1868 = vmatprep.subr.mxu0 0.0
    %1869 = vmatpush1.msra.mxu0 %v1843
    %1870 = vmatprep.subr.mxu0 0.0
    %1871 = vmatpush1.msra.mxu0 %v1844
    %1872 = vmatprep.subr.mxu0 0.0
    %1873 = vmatpush1.msra.mxu0 0.0
    %1874 = vmatprep.subr.mxu0 0.0
    %1875 = vmatpush1.msra.mxu0 0.0
    %1876 = vmatprep.subr.mxu0 0.0
    %1877 = vmatpush1.msra.mxu0 0.0
    %1878 = vmatprep.subr.mxu0 0.0
    %1879 = vmatpush1.msra.mxu0 0.0
    %1880 = vmatprep.subr.mxu0 0.0
    %1881 = vmatpush1.msra.mxu0 0.0
    %1882 = vmatprep.subr.mxu0 0.0
    %1883 = vmatpush1.msra.mxu0 0.0
    %1884 = vmatprep.subr.mxu0 0.0
    %1885 = vmatpush1.msra.mxu0 0.0
    %1886 = vmatprep.subr.mxu0 0.0
    %1887 = vmatpush1.msra.mxu0 0.0
    %1888 = vmatprep.subr.mxu0 0.0
    %1889 = vmatpush1.msra.mxu0 0.0
    %1890 = vmatprep.subr.mxu0 0.0
    %1891 = vmatpush1.msra.mxu0 0.0
    %1892 = vmatprep.subr.mxu0 0.0
    %1893 = vmatpush1.msra.mxu0 0.0
    %1894 = vmatprep.subr.mxu0 0.0
    %1895 = vmatpush1.msra.mxu0 0.0
    %1896 = vmatprep.subr.mxu0 0.0
    %1897 = vmatpush1.msra.mxu0 0.0
    %1898 = vmatprep.subr.mxu0 0.0
    %1899 = vmatpush1.msra.mxu0 0.0
    %1900 = vmatprep.subr.mxu0 0.0
    %1901 = vmatpush1.msra.mxu0 0.0
    %1902 = vmatprep.subr.mxu0 0.0
    %1903 = vmatpush1.msra.mxu0 0.0
    %1904 = vmatprep.subr.mxu0 0.0
    %1905 = vmatpush1.msra.mxu0 0.0
    %1906 = vmatprep.subr.mxu0 0.0
    %1907 = vmatpush1.msra.mxu0 0.0
    %1908 = vmatprep.subr.mxu0 0.0
    %1909 = vmatpush1.msra.mxu0 0.0
    %1910 = vmatprep.subr.mxu0 0.0
    %1911 = vmatpush1.msra.mxu0 0.0
    %1912 = vmatprep.subr.mxu0 0.0
    %1913 = vmatpush1.msra.mxu0 0.0
    %1914 = vmatprep.subr.mxu0 0.0
    %1915 = vmatpush1.msra.mxu0 0.0
    %1916 = vmatprep.subr.mxu0 0.0
    %1917 = vmatpush1.msra.mxu0 0.0
    %1918 = vmatprep.subr.mxu0 0.0
    %1919 = vmatpush1.msra.mxu0 0.0
    %1920 = vmatprep.mubr.f32.mxu0 0.0
    %1921 = vmatmul.mubr.f32.gmra.mrb[0].mxu0 %v1851
    %v1922 = vpop.f32.mrb[0].mxu0
    %v1923 = vadd.f32 %v1849, %v1922
    %v1924 = vpop.f32.mrb[0].mxu0
    %1925 = vmatprep.mubr.f32.mxu0 0.0
    %1926 = vmatmul.mubr.f32.gmra.mrb[0].mxu0 %v1854
    %v1927 = vpop.f32.mrb[0].mxu0
    %v1928 = vadd.f32 %v1849, %v1927
    %v1929 = vpop.f32.mrb[0].mxu0
    %1930 = vdwg.mxu0
    %v1931 = vmax.f32 %v1923, 0.0
    %v1932 = vmax.f32 %v1928, 0.0
    %s1933 = scalar_lea.vmem [#allocation3], 576
    %v1934 = vld [vmem:[%s1933] sm:$0xff]
    %v1935 = vld [vmem:[%s1933 + $0x8] sm:$0xff]
    %v1936 = vld [vmem:[%s1933 + $0x10] sm:$0xff]
    %v1937 = vld [vmem:[%s1933 + $0x18] sm:$0xff]
    %v1938 = vld [vmem:[%s1933 + $0x20] sm:$0xff]
    %v1939 = vld [vmem:[%s1933 + $0x28] sm:$0xff]
    %v1940 = vld [vmem:[%s1933 + $0x30] sm:$0xff]
    %v1941 = vld [vmem:[%s1933 + $0x38] sm:$0xff]
    %v1942 = vld [vmem:[%s5 + $0x9] sm:$0x1]
    %v1943 = vlaneseq
    %v1944 = vshrl.u32 %v1943, 7
    %v1945 = vsub.s32 0, %v1944
    %v1946 = vrot.slane %v1942, %v1945
    %v1948 = vsel %vm56, %v1931, 0
    %v1951 = vsel %vm56, %v1932, 0
    %1953 = vmatprep.subr.mxu0 0.0
    %1954 = vmatpush1.msra.mxu0 %v1934
    %1955 = vmatprep.subr.mxu0 0.0
    %1956 = vmatpush1.msra.mxu0 %v1935
    %1957 = vmatprep.subr.mxu0 0.0
    %1958 = vmatpush1.msra.mxu0 %v1936
    %1959 = vmatprep.subr.mxu0 0.0
    %1960 = vmatpush1.msra.mxu0 %v1937
    %1961 = vmatprep.subr.mxu0 0.0
    %1962 = vmatpush1.msra.mxu0 %v1938
    %1963 = vmatprep.subr.mxu0 0.0
    %1964 = vmatpush1.msra.mxu0 %v1939
    %1965 = vmatprep.subr.mxu0 0.0
    %1966 = vmatpush1.msra.mxu0 %v1940
    %1967 = vmatprep.subr.mxu0 0.0
    %1968 = vmatpush1.msra.mxu0 %v1941
    %1969 = vmatprep.subr.mxu0 0.0
    %1970 = vmatpush1.msra.mxu0 0.0
    %1971 = vmatprep.subr.mxu0 0.0
    %1972 = vmatpush1.msra.mxu0 0.0
    %1973 = vmatprep.subr.mxu0 0.0
    %1974 = vmatpush1.msra.mxu0 0.0
    %1975 = vmatprep.subr.mxu0 0.0
    %1976 = vmatpush1.msra.mxu0 0.0
    %1977 = vmatprep.subr.mxu0 0.0
    %1978 = vmatpush1.msra.mxu0 0.0
    %1979 = vmatprep.subr.mxu0 0.0
    %1980 = vmatpush1.msra.mxu0 0.0
    %1981 = vmatprep.subr.mxu0 0.0
    %1982 = vmatpush1.msra.mxu0 0.0
    %1983 = vmatprep.subr.mxu0 0.0
    %1984 = vmatpush1.msra.mxu0 0.0
    %1985 = vmatprep.subr.mxu0 0.0
    %1986 = vmatpush1.msra.mxu0 0.0
    %1987 = vmatprep.subr.mxu0 0.0
    %1988 = vmatpush1.msra.mxu0 0.0
    %1989 = vmatprep.subr.mxu0 0.0
    %1990 = vmatpush1.msra.mxu0 0.0
    %1991 = vmatprep.subr.mxu0 0.0
    %1992 = vmatpush1.msra.mxu0 0.0
    %1993 = vmatprep.subr.mxu0 0.0
    %1994 = vmatpush1.msra.mxu0 0.0
    %1995 = vmatprep.subr.mxu0 0.0
    %1996 = vmatpush1.msra.mxu0 0.0
    %1997 = vmatprep.subr.mxu0 0.0
    %1998 = vmatpush1.msra.mxu0 0.0
    %1999 = vmatprep.subr.mxu0 0.0
    %2000 = vmatpush1.msra.mxu0 0.0
    %2001 = vmatprep.subr.mxu0 0.0
    %2002 = vmatpush1.msra.mxu0 0.0
    %2003 = vmatprep.subr.mxu0 0.0
    %2004 = vmatpush1.msra.mxu0 0.0
    %2005 = vmatprep.subr.mxu0 0.0
    %2006 = vmatpush1.msra.mxu0 0.0
    %2007 = vmatprep.subr.mxu0 0.0
    %2008 = vmatpush1.msra.mxu0 0.0
    %2009 = vmatprep.subr.mxu0 0.0
    %2010 = vmatpush1.msra.mxu0 0.0
    %2011 = vmatprep.subr.mxu0 0.0
    %2012 = vmatpush1.msra.mxu0 0.0
    %2013 = vmatprep.subr.mxu0 0.0
    %2014 = vmatpush1.msra.mxu0 0.0
    %2015 = vmatprep.subr.mxu0 0.0
    %2016 = vmatpush1.msra.mxu0 0.0
    %2017 = vmatprep.mubr.f32.mxu0 0.0
    %2018 = vmatmul.mubr.f32.gmra.mrb[0].mxu0 %v1948
    %v2019 = vpop.f32.mrb[0].mxu0
    %v2020 = vadd.f32 %v1946, %v2019
    %v2021 = vpop.f32.mrb[0].mxu0
    %2022 = vmatprep.mubr.f32.mxu0 0.0
    %2023 = vmatmul.mubr.f32.gmra.mrb[0].mxu0 %v1951
    %v2024 = vpop.f32.mrb[0].mxu0
    %v2025 = vadd.f32 %v1946, %v2024
    %v2026 = vpop.f32.mrb[0].mxu0
    %2027 = vdwg.mxu0
    %v2028 = vmax.f32 %v2020, 0.0
    %v2029 = vmax.f32 %v2025, 0.0
    %s2030 = scalar_lea.vmem [#allocation3], 640
    %v2031 = vld [vmem:[%s2030] sm:$0xff]
    %v2032 = vld [vmem:[%s2030 + $0x8] sm:$0xff]
    %v2033 = vld [vmem:[%s2030 + $0x10] sm:$0xff]
    %v2034 = vld [vmem:[%s2030 + $0x18] sm:$0xff]
    %v2035 = vld [vmem:[%s2030 + $0x20] sm:$0xff]
    %v2036 = vld [vmem:[%s2030 + $0x28] sm:$0xff]
    %v2037 = vld [vmem:[%s2030 + $0x30] sm:$0xff]
    %v2038 = vld [vmem:[%s2030 + $0x38] sm:$0xff]
    %v2039 = vld [vmem:[%s5 + $0xa] sm:$0x1]
    %v2040 = vlaneseq
    %v2041 = vshrl.u32 %v2040, 7
    %v2042 = vsub.s32 0, %v2041
    %v2043 = vrot.slane %v2039, %v2042
    %v2045 = vsel %vm56, %v2028, 0
    %v2048 = vsel %vm56, %v2029, 0
    %2050 = vmatprep.subr.mxu0 0.0
    %2051 = vmatpush1.msra.mxu0 %v2031
    %2052 = vmatprep.subr.mxu0 0.0
    %2053 = vmatpush1.msra.mxu0 %v2032
    %2054 = vmatprep.subr.mxu0 0.0
    %2055 = vmatpush1.msra.mxu0 %v2033
    %2056 = vmatprep.subr.mxu0 0.0
    %2057 = vmatpush1.msra.mxu0 %v2034
    %2058 = vmatprep.subr.mxu0 0.0
    %2059 = vmatpush1.msra.mxu0 %v2035
    %2060 = vmatprep.subr.mxu0 0.0
    %2061 = vmatpush1.msra.mxu0 %v2036
    %2062 = vmatprep.subr.mxu0 0.0
    %2063 = vmatpush1.msra.mxu0 %v2037
    %2064 = vmatprep.subr.mxu0 0.0
    %2065 = vmatpush1.msra.mxu0 %v2038
    %2066 = vmatprep.subr.mxu0 0.0
    %2067 = vmatpush1.msra.mxu0 0.0
    %2068 = vmatprep.subr.mxu0 0.0
    %2069 = vmatpush1.msra.mxu0 0.0
    %2070 = vmatprep.subr.mxu0 0.0
    %2071 = vmatpush1.msra.mxu0 0.0
    %2072 = vmatprep.subr.mxu0 0.0
    %2073 = vmatpush1.msra.mxu0 0.0
    %2074 = vmatprep.subr.mxu0 0.0
    %2075 = vmatpush1.msra.mxu0 0.0
    %2076 = vmatprep.subr.mxu0 0.0
    %2077 = vmatpush1.msra.mxu0 0.0
    %2078 = vmatprep.subr.mxu0 0.0
    %2079 = vmatpush1.msra.mxu0 0.0
    %2080 = vmatprep.subr.mxu0 0.0
    %2081 = vmatpush1.msra.mxu0 0.0
    %2082 = vmatprep.subr.mxu0 0.0
    %2083 = vmatpush1.msra.mxu0 0.0
    %2084 = vmatprep.subr.mxu0 0.0
    %2085 = vmatpush1.msra.mxu0 0.0
    %2086 = vmatprep.subr.mxu0 0.0
    %2087 = vmatpush1.msra.mxu0 0.0
    %2088 = vmatprep.subr.mxu0 0.0
    %2089 = vmatpush1.msra.mxu0 0.0
    %2090 = vmatprep.subr.mxu0 0.0
    %2091 = vmatpush1.msra.mxu0 0.0
    %2092 = vmatprep.subr.mxu0 0.0
    %2093 = vmatpush1.msra.mxu0 0.0
    %2094 = vmatprep.subr.mxu0 0.0
    %2095 = vmatpush1.msra.mxu0 0.0
    %2096 = vmatprep.subr.mxu0 0.0
    %2097 = vmatpush1.msra.mxu0 0.0
    %2098 = vmatprep.subr.mxu0 0.0
    %2099 = vmatpush1.msra.mxu0 0.0
    %2100 = vmatprep.subr.mxu0 0.0
    %2101 = vmatpush1.msra.mxu0 0.0
    %2102 = vmatprep.subr.mxu0 0.0
    %2103 = vmatpush1.msra.mxu0 0.0
    %2104 = vmatprep.subr.mxu0 0.0
    %2105 = vmatpush1.msra.mxu0 0.0
    %2106 = vmatprep.subr.mxu0 0.0
    %2107 = vmatpush1.msra.mxu0 0.0
    %2108 = vmatprep.subr.mxu0 0.0
    %2109 = vmatpush1.msra.mxu0 0.0
    %2110 = vmatprep.subr.mxu0 0.0
    %2111 = vmatpush1.msra.mxu0 0.0
    %2112 = vmatprep.subr.mxu0 0.0
    %2113 = vmatpush1.msra.mxu0 0.0
    %2114 = vmatprep.mubr.f32.mxu0 0.0
    %2115 = vmatmul.mubr.f32.gmra.mrb[0].mxu0 %v2045
    %v2116 = vpop.f32.mrb[0].mxu0
    %v2117 = vadd.f32 %v2043, %v2116
    %v2118 = vpop.f32.mrb[0].mxu0
    %2119 = vmatprep.mubr.f32.mxu0 0.0
    %2120 = vmatmul.mubr.f32.gmra.mrb[0].mxu0 %v2048
    %v2121 = vpop.f32.mrb[0].mxu0
    %v2122 = vadd.f32 %v2043, %v2121
    %v2123 = vpop.f32.mrb[0].mxu0
    %2124 = vdwg.mxu0
    %2125 = vst.msk [vmem:[%s7] sm:$0xff] %vm56, %v2117
    %2126 = vst.msk [vmem:[%s7 + $0x8] sm:$0xff] %vm56, %v2122
    // Predicated region
    $region34: #{gnn_branch.1} parent=1 // pred_check
      _
    $region35: #{gnn_branch.1} parent=1 // pred_check_branch
      %2128 = sbr.rel (0) target = $region37
    $region36: #{gnn_branch.1} parent=1 // pred_region
      _
    $region37: #{gnn_branch.1} parent=1 // pred_fallthru
      _
    // Predicated region
    $region38: #{gnn_branch.1} parent=1 // pred_check
      _
    $region39: #{gnn_branch.1} parent=1 // pred_check_branch
      %2130 = sbr.rel (0) target = $region41
    $region40: #{gnn_branch.1} parent=1 // pred_region
      _
    $region41: #{gnn_branch.1} parent=1 // pred_fallthru
      _
    %2131 = vsyncpa [#allocation4], 1

</llo_original>
